<compile_context>
chip_gen: v7x
topology: tpu7x:2x2x1
jax: 0.10.0
libtpu: 0.0.40
codegen_flags: <defaults>
</compile_context>

<pallas_src>
import numpy as np

import jax
import jax.numpy as jnp
from jax.experimental import pallas as pl
from jax.experimental.pallas import tpu as pltpu  # noqa: F401  (no TPU-specific knobs needed)

# ----------------------------- model hyper-params -----------------------------
B = 2
SEQ_LEN = 8
IN_DIM = 4
NODE_IN_DIM = 6
HIDDEN = 32
STATION_NUM = 3

NODE_PAD = 8                 # node features zero-padded 6 -> 8 (sublane-aligned slices)
SEQ_H = SEQ_LEN * HIDDEN     # 256


# ------------------------------- fused Pallas kernel -------------------------------
def _astgc_kernel(
    # ---- data ----
    ln_ref, tx_ref, sn_ref, sx_ref, abig_ref, gmat_ref, rep_ref,
    # ---- packed weights ----
    node_w_ref,                       # (16, H): rows 0:8 target_fc (padded), 8:16 station_gcn (padded)
    t_win_ref, t_w2_ref, t_fu_ref,    # target TCN stage-1 [conv1|down], stage-2, fusion FC [static;tcn]
    s_win_ref, s_w2_ref, s_fu_ref,    # station TCN stage-1 [conv1|down], stage-2, fusion FC [static;tcn]
    attn_w1_ref, head_w_ref,          # attention hidden; head = [fusion_gcn_w | attn_w2]
    bias_big_ref, bias_small_ref,     # (4, 2*SEQ_H) and (8, H) packed bias tables
    # ---- output ----
    out_ref,                          # (B + B*N, seq): rows 0:B prediction, rows B: fusion stations
):
    bsz = ln_ref.shape[0]
    n_rows = rep_ref.shape[0]
    seq = out_ref.shape[1]
    h = HIDDEN

    def mm(a, b):
        return jnp.dot(a, b, preferred_element_type=jnp.float32)

    def relu(v):
        return jnp.maximum(v, 0.0)

    # ----- target branch: fc + TCN + fusion FC (batch folded into GEMM rows) -----
    f_t = relu(mm(ln_ref[...], node_w_ref[0:NODE_PAD, :]) + bias_small_ref[0:1, :])      # (B, H)
    x_t = tx_ref[...]                                                                    # (B, seq*Ct)
    p_t = mm(x_t, t_win_ref[...]) + bias_big_ref[0:1, :]                                 # (B, 2*SEQ_H)
    h1_t = relu(p_t[:, :SEQ_H])                                                          # conv1 path
    h2_t = relu(mm(h1_t, t_w2_ref[...]) + bias_big_ref[1:2, :SEQ_H])                     # conv2 path
    tcn_t = relu(h2_t + p_t[:, SEQ_H:])                                                  # + downsample residual
    target_out = relu(mm(f_t, t_fu_ref[0:h, :]) + mm(tcn_t, t_fu_ref[h:h + SEQ_H, :])
                      + bias_small_ref[2:3, :])                                          # (B, H)

    # ----- station branch: GCN + TCN + fusion FC ((batch*station) rows) -----
    sg = (mm(abig_ref[...], mm(sn_ref[...], node_w_ref[NODE_PAD:2 * NODE_PAD, :]))
          + bias_small_ref[1:2, :])                                                      # (B*N, H)
    x_s = sx_ref[...]                                                                    # (B*N, seq*Cs)
    p_s = mm(x_s, s_win_ref[...]) + bias_big_ref[2:3, :]                                 # (B*N, 2*SEQ_H)
    h1_s = relu(p_s[:, :SEQ_H])
    h2_s = relu(mm(h1_s, s_w2_ref[...]) + bias_big_ref[3:4, :SEQ_H])
    tcn_s = relu(h2_s + p_s[:, SEQ_H:])
    station_out = relu(mm(sg, s_fu_ref[0:h, :]) + mm(tcn_s, s_fu_ref[h:h + SEQ_H, :])
                       + bias_small_ref[3:4, :])                                         # (B*N, H)

    # ----- fusion attention MLP; nn.Softmax() legacy implicit dim=0 (batch axis) -----
    a1 = relu(mm(station_out, attn_w1_ref[...]) + bias_small_ref[4:5, :])                # (B*N, H)
    z = mm(a1, head_w_ref[:, seq:seq + 1]) + bias_small_ref[5:6, 0:1]                    # (B*N, 1)
    z = z - jnp.max(z, axis=0, keepdims=True)    # constant shift (same column everywhere)
    e = jnp.exp(z)
    attn = e / mm(gmat_ref[...], e)              # normalize over the batch dim per station

    # ----- fusion GCN: edges 0 -> 1..N per batch, edge weights = attention -----
    fg_w = head_w_ref[:, 0:seq]                                                          # (H, seq)
    fg_b = bias_small_ref[6:7, 0:seq]                                                    # (1, seq)
    msg = mm(target_out, fg_w)                                                           # (B, seq)
    fus = attn * mm(rep_ref[...], msg) + fg_b                                            # (B*N, seq)

    # node 0 has no incoming edges -> its aggregation is zero; output = bias only.
    out_ref[0:bsz, :] = jnp.broadcast_to(fg_b, (bsz, seq))
    out_ref[bsz:bsz + n_rows, :] = fus


# ---------------------------- parameter construction ---------------------------
def _nrm(key, shape, scale=0.1):
    return scale * jax.random.normal(key, shape, jnp.float32)


def _init_tcn(key, c_in, h):
    ks = jax.random.split(key, 8)
    return {
        "w1a": _nrm(ks[0], (h, c_in)), "w1b": _nrm(ks[1], (h, c_in)), "b1": _nrm(ks[2], (h,)),
        "w2a": _nrm(ks[3], (h, h)),    "w2b": _nrm(ks[4], (h, h)),    "b2": _nrm(ks[5], (h,)),
        "wd": _nrm(ks[6], (h, c_in)),  "bd": _nrm(ks[7], (h,)),
    }


def init_params(key):
    ks = jax.random.split(key, 16)
    fused = 2 * SEQ_LEN * HIDDEN
    return {
        "target_fc_w": _nrm(ks[0], (NODE_IN_DIM, HIDDEN)),
        "target_fc_b": _nrm(ks[1], (1, HIDDEN)),
        "target_tcn": _init_tcn(ks[2], IN_DIM - 1, HIDDEN),
        "target_fusion_w": _nrm(ks[3], (fused, HIDDEN)),
        "target_fusion_b": _nrm(ks[4], (1, HIDDEN)),
        "station_gcn_w": _nrm(ks[5], (NODE_IN_DIM, HIDDEN)),
        "station_gcn_b": _nrm(ks[6], (1, HIDDEN)),
        "station_tcn": _init_tcn(ks[7], IN_DIM, HIDDEN),
        "station_fusion_w": _nrm(ks[8], (fused, HIDDEN)),
        "station_fusion_b": _nrm(ks[9], (1, HIDDEN)),
        "attn_w1": _nrm(ks[10], (HIDDEN, HIDDEN)),
        "attn_b1": _nrm(ks[11], (1, HIDDEN)),
        "attn_w2": _nrm(ks[12], (HIDDEN, 1)),
        "attn_b2": _nrm(ks[13], (1, 1)),
        "fusion_gcn_w": _nrm(ks[14], (HIDDEN, SEQ_LEN)),
        "fusion_gcn_b": _nrm(ks[15], (1, SEQ_LEN)),
    }


def _prep_tcn(tcn, seq):
    """Fold the 2-tap causal conv structure of the TemporalBlock into block matrices
    acting on time-flattened (rows, seq*channels) activations:
        out[(t, h)] = sum_c w_cur[h, c] * x[(t, c)] + w_prev[h, c] * x[(t-1, c)] + b[h]
    becomes a single GEMM with a kron(time-structure, tap) weight.  The 1x1 residual
    downsample is fused column-wise into the stage-1 weight: [conv1 | downsample]."""
    eye = jnp.eye(seq, dtype=jnp.float32)
    shift = jnp.eye(seq, k=1, dtype=jnp.float32)  # shift[t-1, t] = 1  (causal previous tap)
    w1 = jnp.kron(eye, tcn["w1b"].T) + jnp.kron(shift, tcn["w1a"].T)   # (seq*C, seq*H)
    w2 = jnp.kron(eye, tcn["w2b"].T) + jnp.kron(shift, tcn["w2a"].T)   # (seq*H, seq*H)
    wd = jnp.kron(eye, tcn["wd"].T)                                     # (seq*C, seq*H)
    b1 = jnp.tile(tcn["b1"], seq)
    b2 = jnp.tile(tcn["b2"], seq)
    bd = jnp.tile(tcn["bd"], seq)
    w_in = jnp.concatenate([w1, wd], axis=1)                            # (seq*C, 2*seq*H)
    b_in = jnp.concatenate([b1, bd])                                    # (2*seq*H,)
    return w_in, b_in, w2, b2


def _prep_fusion(w, seq, h):
    """The fusion FC consumes the interleaved flatten of [static_vec, tcn_t] over t.
    Split its (2*seq*h, h) weight into the summed static part (static vec is repeated
    for every t) and the time-stacked TCN part, then row-stack them: [static; tcn]."""
    w3 = w.reshape(seq, 2 * h, h)
    w_static = jnp.sum(w3[:, :h, :], axis=0)          # (h, h)
    w_tcn = w3[:, h:, :].reshape(seq * h, h)          # (seq*h, h)
    return jnp.concatenate([w_static, w_tcn], axis=0)  # (h + seq*h, h)


def _pad_row(v, width):
    v = jnp.ravel(v).astype(jnp.float32)
    return jnp.pad(v, (0, width - v.shape[0]))


def prepare_params(params):
    """One-off preprocessing of raw module parameters into kernel-ready packed matrices."""
    seq, h = SEQ_LEN, HIDDEN
    t_win, t_bin, t_w2, t_b2 = _prep_tcn(params["target_tcn"], seq)
    s_win, s_bin, s_w2, s_b2 = _prep_tcn(params["station_tcn"], seq)

    # node-feature weights, padded 6 -> 8 rows so kernel slices are sublane-aligned
    node_w = jnp.zeros((2 * NODE_PAD, h), jnp.float32)
    node_w = node_w.at[0:NODE_IN_DIM].set(params["target_fc_w"])
    node_w = node_w.at[NODE_PAD:NODE_PAD + NODE_IN_DIM].set(params["station_gcn_w"])

    # fusion-GCN weight (H, seq) and attention head weight (H, 1) share one table
    head_w = jnp.concatenate([params["fusion_gcn_w"], params["attn_w2"]], axis=1)  # (H, seq+1)

    bias_big = jnp.stack([
        t_bin, _pad_row(t_b2, 2 * SEQ_H),
        s_bin, _pad_row(s_b2, 2 * SEQ_H),
    ])                                                                              # (4, 512)

    bias_small = jnp.stack([
        _pad_row(params["target_fc_b"], h),       # row 0
        _pad_row(params["station_gcn_b"], h),     # row 1
        _pad_row(params["target_fusion_b"], h),   # row 2
        _pad_row(params["station_fusion_b"], h),  # row 3
        _pad_row(params["attn_b1"], h),           # row 4
        _pad_row(params["attn_b2"], h),           # row 5 (col 0)
        _pad_row(params["fusion_gcn_b"], h),      # row 6 (cols 0:seq)
        jnp.zeros((h,), jnp.float32),             # row 7 (padding)
    ])                                                                              # (8, 32)

    return {
        "node_w": node_w,
        "t_win": t_win, "t_w2": t_w2, "t_fu_w": _prep_fusion(params["target_fusion_w"], seq, h),
        "s_win": s_win, "s_w2": s_w2, "s_fu_w": _prep_fusion(params["station_fusion_w"], seq, h),
        "attn_w1": params["attn_w1"], "head_w": head_w,
        "bias_big": bias_big, "bias_small": bias_small,
    }


# --------------------------------- forward pass --------------------------------
def astgc_forward(kparams, local_node, local_features, station_nodes,
                  station_features, station_dist):
    bsz = local_node.shape[0]
    n = station_dist.shape[1]
    seq = SEQ_LEN

    # ---- flatten inputs into lane-dense (rows, features) layouts ----
    ln = jnp.pad(local_node.reshape(bsz, NODE_IN_DIM),
                 ((0, 0), (0, NODE_PAD - NODE_IN_DIM)))                              # (B, 8)
    tx = local_features.reshape(bsz, seq * (IN_DIM - 1))                             # (B, seq*Ct)
    sn = jnp.pad(station_nodes.reshape(bsz * n, NODE_IN_DIM),
                 ((0, 0), (0, NODE_PAD - NODE_IN_DIM)))                              # (B*N, 8)
    sx = jnp.transpose(station_features, (0, 2, 1, 3)).reshape(bsz * n, seq * IN_DIM)  # (B*N, seq*Cs)

    # ---- block-diagonal station-GCN aggregation matrix (triu hoisted out of the kernel) ----
    # out[b, j] = sum_{i<=j} dist[b, i, j] * msg[b, i]   ==>   Abig @ msg_flat
    a_triu = jnp.triu(station_dist[:, :, :, 0])                                      # (B, N, N)
    a_t = jnp.swapaxes(a_triu, 1, 2)                                                 # [b, j, i]
    abig = (jnp.eye(bsz, dtype=jnp.float32)[:, None, :, None]
            * a_t[:, :, None, :]).reshape(bsz * n, bsz * n)                          # (B*N, B*N)

    # ---- static combinatorial matrices (trace-time constants) ----
    rows = np.arange(bsz * n)
    gmat = jnp.asarray((rows[:, None] % n) == (rows[None, :] % n), jnp.float32)        # softmax groups
    rep = jnp.asarray((rows[:, None] // n) == np.arange(bsz)[None, :], jnp.float32)    # batch replicate

    out = pl.pallas_call(
        _astgc_kernel,
        out_shape=jax.ShapeDtypeStruct((bsz + bsz * n, seq), jnp.float32),
    )(ln, tx, sn, sx, abig, gmat, rep,
      kparams["node_w"],
      kparams["t_win"], kparams["t_w2"], kparams["t_fu_w"],
      kparams["s_win"], kparams["s_w2"], kparams["s_fu_w"],
      kparams["attn_w1"], kparams["head_w"],
      kparams["bias_big"], kparams["bias_small"])

    # rows 0..B-1 are the fusion-GCN output for node 0 == the prediction
    return out[:bsz].reshape(bsz, seq, 1)


# ------------------------------------- main -------------------------------------
if __name__ == "__main__":
    key = jax.random.PRNGKey(0)
    k1, k2, k3, k4, k5 = jax.random.split(key, 5)

    local_node = jax.random.normal(k1, (B, 1, NODE_IN_DIM), jnp.float32)
    local_features = jax.random.normal(k2, (B, SEQ_LEN, 1, IN_DIM - 1), jnp.float32)
    station_nodes = jax.random.normal(k3, (B, STATION_NUM, NODE_IN_DIM), jnp.float32)
    station_features = jax.random.normal(k4, (B, SEQ_LEN, STATION_NUM, IN_DIM), jnp.float32)
    # strictly positive so torch's `station_dist != 0` filter keeps the full upper triangle
    station_dist = jax.random.uniform(k5, (B, STATION_NUM, STATION_NUM, 2), jnp.float32,
                                      minval=0.5, maxval=1.5)

    kparams = prepare_params(init_params(jax.random.PRNGKey(42)))

    forward = jax.jit(astgc_forward)
    pred = forward(kparams, local_node, local_features, station_nodes,
                   station_features, station_dist)
    jax.block_until_ready(pred)
    assert pred.shape == (B, SEQ_LEN, 1) and pred.dtype == jnp.float32
    print("KERNEL_OK")
</pallas_src>

<mosaic_0001>
module attributes {stable_mosaic.version = 11 : i64} {
  func.func @_astgc_kernel(%arg0: memref<2x8xf32, #tpu.memory_space<vmem>>, %arg1: memref<2x24xf32, #tpu.memory_space<vmem>>, %arg2: memref<6x8xf32, #tpu.memory_space<vmem>>, %arg3: memref<6x32xf32, #tpu.memory_space<vmem>>, %arg4: memref<6x6xf32, #tpu.memory_space<vmem>>, %arg5: memref<6x6xf32, #tpu.memory_space<vmem>>, %arg6: memref<6x2xf32, #tpu.memory_space<vmem>>, %arg7: memref<16x32xf32, #tpu.memory_space<vmem>>, %arg8: memref<24x512xf32, #tpu.memory_space<vmem>>, %arg9: memref<256x256xf32, #tpu.memory_space<vmem>>, %arg10: memref<288x32xf32, #tpu.memory_space<vmem>>, %arg11: memref<32x512xf32, #tpu.memory_space<vmem>>, %arg12: memref<256x256xf32, #tpu.memory_space<vmem>>, %arg13: memref<288x32xf32, #tpu.memory_space<vmem>>, %arg14: memref<32x32xf32, #tpu.memory_space<vmem>>, %arg15: memref<32x9xf32, #tpu.memory_space<vmem>>, %arg16: memref<4x512xf32, #tpu.memory_space<vmem>>, %arg17: memref<8x32xf32, #tpu.memory_space<vmem>>, %arg18: memref<8x8xf32, #tpu.memory_space<vmem>>) attributes {dimension_semantics = [], scalar_prefetch = 0 : i64, scratch_operands = 0 : i64, tpu.core_type = #tpu.core_type<tc>} {
    %c0 = arith.constant 0 : index
    %c0_0 = arith.constant 0 : index
    %0 = vector.load %arg0[%c0, %c0_0] : memref<2x8xf32, #tpu.memory_space<vmem>>, vector<2x8xf32>
    %c0_1 = arith.constant 0 : index
    %c0_2 = arith.constant 0 : index
    %1 = vector.load %arg7[%c0_1, %c0_2] : memref<16x32xf32, #tpu.memory_space<vmem>>, vector<8x32xf32>
    %cst = arith.constant dense<0.000000e+00> : vector<2x32xf32>
    %2 = tpu.matmul %0, %1, %cst {dimension_numbers = #tpu.dot_dimension_numbers<[1], [0], [0], [1], [0, 0, 1, 1], [], []>} : vector<2x8xf32>, vector<8x32xf32>, vector<2x32xf32> -> vector<2x32xf32>
    %c0_3 = arith.constant 0 : index
    %c0_4 = arith.constant 0 : index
    %3 = vector.load %arg17[%c0_3, %c0_4] : memref<8x32xf32, #tpu.memory_space<vmem>>, vector<1x32xf32>
    %4 = vector.broadcast %3 : vector<1x32xf32> to vector<2x32xf32>
    %5 = arith.addf %2, %4 : vector<2x32xf32>
    %cst_5 = arith.constant 0.000000e+00 : f32
    %6 = vector.broadcast %cst_5 : f32 to vector<2x32xf32>
    %7 = arith.maximumf %5, %6 : vector<2x32xf32>
    %c0_6 = arith.constant 0 : index
    %c0_7 = arith.constant 0 : index
    %8 = vector.load %arg1[%c0_6, %c0_7] : memref<2x24xf32, #tpu.memory_space<vmem>>, vector<2x24xf32>
    %c0_8 = arith.constant 0 : index
    %c0_9 = arith.constant 0 : index
    %9 = vector.load %arg8[%c0_8, %c0_9] : memref<24x512xf32, #tpu.memory_space<vmem>>, vector<24x512xf32>
    %cst_10 = arith.constant dense<0.000000e+00> : vector<2x512xf32>
    %10 = tpu.matmul %8, %9, %cst_10 {dimension_numbers = #tpu.dot_dimension_numbers<[1], [0], [0], [1], [0, 0, 1, 1], [], []>} : vector<2x24xf32>, vector<24x512xf32>, vector<2x512xf32> -> vector<2x512xf32>
    %c0_11 = arith.constant 0 : index
    %c0_12 = arith.constant 0 : index
    %11 = vector.load %arg16[%c0_11, %c0_12] : memref<4x512xf32, #tpu.memory_space<vmem>>, vector<1x512xf32>
    %12 = vector.broadcast %11 : vector<1x512xf32> to vector<2x512xf32>
    %13 = arith.addf %10, %12 : vector<2x512xf32>
    %14 = vector.extract_strided_slice %13 {offsets = [0, 0], sizes = [2, 256], strides = [1, 1]} : vector<2x512xf32> to vector<2x256xf32>
    %cst_13 = arith.constant 0.000000e+00 : f32
    %15 = vector.broadcast %cst_13 : f32 to vector<2x256xf32>
    %16 = arith.maximumf %14, %15 : vector<2x256xf32>
    %c0_14 = arith.constant 0 : index
    %c0_15 = arith.constant 0 : index
    %17 = vector.load %arg9[%c0_14, %c0_15] : memref<256x256xf32, #tpu.memory_space<vmem>>, vector<256x256xf32>
    %cst_16 = arith.constant dense<0.000000e+00> : vector<2x256xf32>
    %18 = tpu.matmul %16, %17, %cst_16 {dimension_numbers = #tpu.dot_dimension_numbers<[1], [0], [0], [1], [0, 0, 1, 1], [], []>} : vector<2x256xf32>, vector<256x256xf32>, vector<2x256xf32> -> vector<2x256xf32>
    %c1 = arith.constant 1 : index
    %c0_17 = arith.constant 0 : index
    %19 = vector.load %arg16[%c1, %c0_17] : memref<4x512xf32, #tpu.memory_space<vmem>>, vector<1x256xf32>
    %20 = vector.broadcast %19 : vector<1x256xf32> to vector<2x256xf32>
    %21 = arith.addf %18, %20 : vector<2x256xf32>
    %cst_18 = arith.constant 0.000000e+00 : f32
    %22 = vector.broadcast %cst_18 : f32 to vector<2x256xf32>
    %23 = arith.maximumf %21, %22 : vector<2x256xf32>
    %24 = vector.extract_strided_slice %13 {offsets = [0, 256], sizes = [2, 256], strides = [1, 1]} : vector<2x512xf32> to vector<2x256xf32>
    %25 = arith.addf %23, %24 : vector<2x256xf32>
    %cst_19 = arith.constant 0.000000e+00 : f32
    %26 = vector.broadcast %cst_19 : f32 to vector<2x256xf32>
    %27 = arith.maximumf %25, %26 : vector<2x256xf32>
    %c0_20 = arith.constant 0 : index
    %c0_21 = arith.constant 0 : index
    %28 = vector.load %arg10[%c0_20, %c0_21] : memref<288x32xf32, #tpu.memory_space<vmem>>, vector<32x32xf32>
    %cst_22 = arith.constant dense<0.000000e+00> : vector<2x32xf32>
    %29 = tpu.matmul %7, %28, %cst_22 {dimension_numbers = #tpu.dot_dimension_numbers<[1], [0], [0], [1], [0, 0, 1, 1], [], []>} : vector<2x32xf32>, vector<32x32xf32>, vector<2x32xf32> -> vector<2x32xf32>
    %c32 = arith.constant 32 : index
    %c0_23 = arith.constant 0 : index
    %30 = vector.load %arg10[%c32, %c0_23] : memref<288x32xf32, #tpu.memory_space<vmem>>, vector<256x32xf32>
    %cst_24 = arith.constant dense<0.000000e+00> : vector<2x32xf32>
    %31 = tpu.matmul %27, %30, %cst_24 {dimension_numbers = #tpu.dot_dimension_numbers<[1], [0], [0], [1], [0, 0, 1, 1], [], []>} : vector<2x256xf32>, vector<256x32xf32>, vector<2x32xf32> -> vector<2x32xf32>
    %32 = arith.addf %29, %31 : vector<2x32xf32>
    %c2 = arith.constant 2 : index
    %c0_25 = arith.constant 0 : index
    %33 = vector.load %arg17[%c2, %c0_25] : memref<8x32xf32, #tpu.memory_space<vmem>>, vector<1x32xf32>
    %34 = vector.broadcast %33 : vector<1x32xf32> to vector<2x32xf32>
    %35 = arith.addf %32, %34 : vector<2x32xf32>
    %cst_26 = arith.constant 0.000000e+00 : f32
    %36 = vector.broadcast %cst_26 : f32 to vector<2x32xf32>
    %37 = arith.maximumf %35, %36 : vector<2x32xf32>
    %c0_27 = arith.constant 0 : index
    %c0_28 = arith.constant 0 : index
    %38 = vector.load %arg4[%c0_27, %c0_28] : memref<6x6xf32, #tpu.memory_space<vmem>>, vector<6x6xf32>
    %c0_29 = arith.constant 0 : index
    %c0_30 = arith.constant 0 : index
    %39 = vector.load %arg2[%c0_29, %c0_30] : memref<6x8xf32, #tpu.memory_space<vmem>>, vector<6x8xf32>
    %c8 = arith.constant 8 : index
    %c0_31 = arith.constant 0 : index
    %40 = vector.load %arg7[%c8, %c0_31] : memref<16x32xf32, #tpu.memory_space<vmem>>, vector<8x32xf32>
    %cst_32 = arith.constant dense<0.000000e+00> : vector<6x32xf32>
    %41 = tpu.matmul %39, %40, %cst_32 {dimension_numbers = #tpu.dot_dimension_numbers<[1], [0], [0], [1], [0, 0, 1, 1], [], []>} : vector<6x8xf32>, vector<8x32xf32>, vector<6x32xf32> -> vector<6x32xf32>
    %cst_33 = arith.constant dense<0.000000e+00> : vector<6x32xf32>
    %42 = tpu.matmul %38, %41, %cst_33 {dimension_numbers = #tpu.dot_dimension_numbers<[1], [0], [0], [1], [0, 0, 1, 1], [], []>} : vector<6x6xf32>, vector<6x32xf32>, vector<6x32xf32> -> vector<6x32xf32>
    %c1_34 = arith.constant 1 : index
    %c0_35 = arith.constant 0 : index
    %43 = vector.load %arg17[%c1_34, %c0_35] : memref<8x32xf32, #tpu.memory_space<vmem>>, vector<1x32xf32>
    %44 = vector.broadcast %43 : vector<1x32xf32> to vector<6x32xf32>
    %45 = arith.addf %42, %44 : vector<6x32xf32>
    %c0_36 = arith.constant 0 : index
    %c0_37 = arith.constant 0 : index
    %46 = vector.load %arg3[%c0_36, %c0_37] : memref<6x32xf32, #tpu.memory_space<vmem>>, vector<6x32xf32>
    %c0_38 = arith.constant 0 : index
    %c0_39 = arith.constant 0 : index
    %47 = vector.load %arg11[%c0_38, %c0_39] : memref<32x512xf32, #tpu.memory_space<vmem>>, vector<32x512xf32>
    %cst_40 = arith.constant dense<0.000000e+00> : vector<6x512xf32>
    %48 = tpu.matmul %46, %47, %cst_40 {dimension_numbers = #tpu.dot_dimension_numbers<[1], [0], [0], [1], [0, 0, 1, 1], [], []>} : vector<6x32xf32>, vector<32x512xf32>, vector<6x512xf32> -> vector<6x512xf32>
    %c2_41 = arith.constant 2 : index
    %c0_42 = arith.constant 0 : index
    %49 = vector.load %arg16[%c2_41, %c0_42] : memref<4x512xf32, #tpu.memory_space<vmem>>, vector<1x512xf32>
    %50 = vector.broadcast %49 : vector<1x512xf32> to vector<6x512xf32>
    %51 = arith.addf %48, %50 : vector<6x512xf32>
    %52 = vector.extract_strided_slice %51 {offsets = [0, 0], sizes = [6, 256], strides = [1, 1]} : vector<6x512xf32> to vector<6x256xf32>
    %cst_43 = arith.constant 0.000000e+00 : f32
    %53 = vector.broadcast %cst_43 : f32 to vector<6x256xf32>
    %54 = arith.maximumf %52, %53 : vector<6x256xf32>
    %c0_44 = arith.constant 0 : index
    %c0_45 = arith.constant 0 : index
    %55 = vector.load %arg12[%c0_44, %c0_45] : memref<256x256xf32, #tpu.memory_space<vmem>>, vector<256x256xf32>
    %cst_46 = arith.constant dense<0.000000e+00> : vector<6x256xf32>
    %56 = tpu.matmul %54, %55, %cst_46 {dimension_numbers = #tpu.dot_dimension_numbers<[1], [0], [0], [1], [0, 0, 1, 1], [], []>} : vector<6x256xf32>, vector<256x256xf32>, vector<6x256xf32> -> vector<6x256xf32>
    %c3 = arith.constant 3 : index
    %c0_47 = arith.constant 0 : index
    %57 = vector.load %arg16[%c3, %c0_47] : memref<4x512xf32, #tpu.memory_space<vmem>>, vector<1x256xf32>
    %58 = vector.broadcast %57 : vector<1x256xf32> to vector<6x256xf32>
    %59 = arith.addf %56, %58 : vector<6x256xf32>
    %cst_48 = arith.constant 0.000000e+00 : f32
    %60 = vector.broadcast %cst_48 : f32 to vector<6x256xf32>
    %61 = arith.maximumf %59, %60 : vector<6x256xf32>
    %62 = vector.extract_strided_slice %51 {offsets = [0, 256], sizes = [6, 256], strides = [1, 1]} : vector<6x512xf32> to vector<6x256xf32>
    %63 = arith.addf %61, %62 : vector<6x256xf32>
    %cst_49 = arith.constant 0.000000e+00 : f32
    %64 = vector.broadcast %cst_49 : f32 to vector<6x256xf32>
    %65 = arith.maximumf %63, %64 : vector<6x256xf32>
    %c0_50 = arith.constant 0 : index
    %c0_51 = arith.constant 0 : index
    %66 = vector.load %arg13[%c0_50, %c0_51] : memref<288x32xf32, #tpu.memory_space<vmem>>, vector<32x32xf32>
    %cst_52 = arith.constant dense<0.000000e+00> : vector<6x32xf32>
    %67 = tpu.matmul %45, %66, %cst_52 {dimension_numbers = #tpu.dot_dimension_numbers<[1], [0], [0], [1], [0, 0, 1, 1], [], []>} : vector<6x32xf32>, vector<32x32xf32>, vector<6x32xf32> -> vector<6x32xf32>
    %c32_53 = arith.constant 32 : index
    %c0_54 = arith.constant 0 : index
    %68 = vector.load %arg13[%c32_53, %c0_54] : memref<288x32xf32, #tpu.memory_space<vmem>>, vector<256x32xf32>
    %cst_55 = arith.constant dense<0.000000e+00> : vector<6x32xf32>
    %69 = tpu.matmul %65, %68, %cst_55 {dimension_numbers = #tpu.dot_dimension_numbers<[1], [0], [0], [1], [0, 0, 1, 1], [], []>} : vector<6x256xf32>, vector<256x32xf32>, vector<6x32xf32> -> vector<6x32xf32>
    %70 = arith.addf %67, %69 : vector<6x32xf32>
    %c3_56 = arith.constant 3 : index
    %c0_57 = arith.constant 0 : index
    %71 = vector.load %arg17[%c3_56, %c0_57] : memref<8x32xf32, #tpu.memory_space<vmem>>, vector<1x32xf32>
    %72 = vector.broadcast %71 : vector<1x32xf32> to vector<6x32xf32>
    %73 = arith.addf %70, %72 : vector<6x32xf32>
    %cst_58 = arith.constant 0.000000e+00 : f32
    %74 = vector.broadcast %cst_58 : f32 to vector<6x32xf32>
    %75 = arith.maximumf %73, %74 : vector<6x32xf32>
    %c0_59 = arith.constant 0 : index
    %c0_60 = arith.constant 0 : index
    %76 = vector.load %arg14[%c0_59, %c0_60] : memref<32x32xf32, #tpu.memory_space<vmem>>, vector<32x32xf32>
    %cst_61 = arith.constant dense<0.000000e+00> : vector<6x32xf32>
    %77 = tpu.matmul %75, %76, %cst_61 {dimension_numbers = #tpu.dot_dimension_numbers<[1], [0], [0], [1], [0, 0, 1, 1], [], []>} : vector<6x32xf32>, vector<32x32xf32>, vector<6x32xf32> -> vector<6x32xf32>
    %c4 = arith.constant 4 : index
    %c0_62 = arith.constant 0 : index
    %78 = vector.load %arg17[%c4, %c0_62] : memref<8x32xf32, #tpu.memory_space<vmem>>, vector<1x32xf32>
    %79 = vector.broadcast %78 : vector<1x32xf32> to vector<6x32xf32>
    %80 = arith.addf %77, %79 : vector<6x32xf32>
    %cst_63 = arith.constant 0.000000e+00 : f32
    %81 = vector.broadcast %cst_63 : f32 to vector<6x32xf32>
    %82 = arith.maximumf %80, %81 : vector<6x32xf32>
    %c0_64 = arith.constant 0 : index
    %c8_65 = arith.constant 8 : index
    %83 = vector.load %arg15[%c0_64, %c8_65] : memref<32x9xf32, #tpu.memory_space<vmem>>, vector<32x1xf32>
    %cst_66 = arith.constant dense<0.000000e+00> : vector<6x1xf32>
    %84 = tpu.matmul %82, %83, %cst_66 {dimension_numbers = #tpu.dot_dimension_numbers<[1], [0], [0], [1], [0, 0, 1, 1], [], []>} : vector<6x32xf32>, vector<32x1xf32>, vector<6x1xf32> -> vector<6x1xf32>
    %c5 = arith.constant 5 : index
    %c0_67 = arith.constant 0 : index
    %85 = vector.load %arg17[%c5, %c0_67] : memref<8x32xf32, #tpu.memory_space<vmem>>, vector<1x1xf32>
    %86 = vector.broadcast %85 : vector<1x1xf32> to vector<6x1xf32>
    %87 = arith.addf %84, %86 : vector<6x1xf32>
    %cst_68 = arith.constant dense<0xFF800000> : vector<1xf32>
    %88 = vector.multi_reduction <maximumf>, %87, %cst_68 [0] : vector<6x1xf32> to vector<1xf32>
    %89 = vector.shape_cast %88 : vector<1xf32> to vector<1x1xf32>
    %90 = vector.broadcast %89 : vector<1x1xf32> to vector<6x1xf32>
    %91 = arith.subf %87, %90 : vector<6x1xf32>
    %92 = math.exp %91 : vector<6x1xf32>
    %c0_69 = arith.constant 0 : index
    %c0_70 = arith.constant 0 : index
    %93 = vector.load %arg5[%c0_69, %c0_70] : memref<6x6xf32, #tpu.memory_space<vmem>>, vector<6x6xf32>
    %cst_71 = arith.constant dense<0.000000e+00> : vector<6x1xf32>
    %94 = tpu.matmul %93, %92, %cst_71 {dimension_numbers = #tpu.dot_dimension_numbers<[1], [0], [0], [1], [0, 0, 1, 1], [], []>} : vector<6x6xf32>, vector<6x1xf32>, vector<6x1xf32> -> vector<6x1xf32>
    %95 = arith.divf %92, %94 : vector<6x1xf32>
    %c0_72 = arith.constant 0 : index
    %c0_73 = arith.constant 0 : index
    %96 = vector.load %arg15[%c0_72, %c0_73] : memref<32x9xf32, #tpu.memory_space<vmem>>, vector<32x8xf32>
    %c6 = arith.constant 6 : index
    %c0_74 = arith.constant 0 : index
    %97 = vector.load %arg17[%c6, %c0_74] : memref<8x32xf32, #tpu.memory_space<vmem>>, vector<1x8xf32>
    %cst_75 = arith.constant dense<0.000000e+00> : vector<2x8xf32>
    %98 = tpu.matmul %37, %96, %cst_75 {dimension_numbers = #tpu.dot_dimension_numbers<[1], [0], [0], [1], [0, 0, 1, 1], [], []>} : vector<2x32xf32>, vector<32x8xf32>, vector<2x8xf32> -> vector<2x8xf32>
    %c0_76 = arith.constant 0 : index
    %c0_77 = arith.constant 0 : index
    %99 = vector.load %arg6[%c0_76, %c0_77] : memref<6x2xf32, #tpu.memory_space<vmem>>, vector<6x2xf32>
    %cst_78 = arith.constant dense<0.000000e+00> : vector<6x8xf32>
    %100 = tpu.matmul %99, %98, %cst_78 {dimension_numbers = #tpu.dot_dimension_numbers<[1], [0], [0], [1], [0, 0, 1, 1], [], []>} : vector<6x2xf32>, vector<2x8xf32>, vector<6x8xf32> -> vector<6x8xf32>
    %101 = vector.broadcast %95 : vector<6x1xf32> to vector<6x8xf32>
    %102 = arith.mulf %101, %100 : vector<6x8xf32>
    %103 = vector.broadcast %97 : vector<1x8xf32> to vector<6x8xf32>
    %104 = arith.addf %102, %103 : vector<6x8xf32>
    %105 = vector.shape_cast %97 : vector<1x8xf32> to vector<1x8xf32>
    %106 = vector.broadcast %105 : vector<1x8xf32> to vector<2x8xf32>
    %c0_79 = arith.constant 0 : index
    %c0_80 = arith.constant 0 : index
    %107 = vector.load %arg18[%c0_79, %c0_80] : memref<8x8xf32, #tpu.memory_space<vmem>>, vector<2x8xf32>
    tpu.vector_store %arg18[%c0_79, %c0_80], %106 {strides = array<i32>} : memref<8x8xf32, #tpu.memory_space<vmem>>, vector<2x8xf32>,
    %c2_81 = arith.constant 2 : index
    %c0_82 = arith.constant 0 : index
    %108 = vector.load %arg18[%c2_81, %c0_82] : memref<8x8xf32, #tpu.memory_space<vmem>>, vector<6x8xf32>
    tpu.vector_store %arg18[%c2_81, %c0_82], %104 {strides = array<i32>} : memref<8x8xf32, #tpu.memory_space<vmem>>, vector<6x8xf32>,
    return
  }
}

</mosaic_0001>

<llo_original>
// kernel: astgc_forward.1
$region0: #{astgc_forward.1}
  #allocation0 [shape = 'u32[]', space=smem, size = 0x4, offset = 0x4, fixed_abs, tag = 'smem constant byte address 0x4 - core index']
  #allocation1 [shape = 'u32[144,128]{1,0:T(1,128)}', space=vmem, size = 0x12000, scoped, tag = 'internal scratch']
  %s0 = inlined_call_operand.vmem [shape: f32[2,8], index: 0, kind: input, shape index: {}]
  %s1 = inlined_call_operand.vmem [shape: f32[2,24], index: 1, kind: input, shape index: {}]
  %s2 = inlined_call_operand.vmem [shape: f32[6,8], index: 2, kind: input, shape index: {}]
  %s3 = inlined_call_operand.vmem [shape: f32[6,32], index: 3, kind: input, shape index: {}]
  %s4 = inlined_call_operand.vmem [shape: f32[6,6], index: 4, kind: input, shape index: {}]
  %s5 = inlined_call_operand.hbm [shape: f32[6,6], index: 5, kind: input, shape index: {}]
  %s6 = inlined_call_operand.hbm [shape: f32[6,2], index: 6, kind: input, shape index: {}]
  %s7 = inlined_call_operand.hbm [shape: f32[16,32], index: 7, kind: input, shape index: {}]
  %s8 = inlined_call_operand.hbm [shape: f32[24,512], index: 8, kind: input, shape index: {}]
  %s9 = inlined_call_operand.vmem [shape: f32[256,256], index: 9, kind: input, shape index: {}]
  %s10 = inlined_call_operand.vmem [shape: f32[288,32], index: 10, kind: input, shape index: {}]
  %s11 = inlined_call_operand.vmem [shape: f32[32,512], index: 11, kind: input, shape index: {}]
  %s12 = inlined_call_operand.vmem [shape: f32[256,256], index: 12, kind: input, shape index: {}]
  %s13 = inlined_call_operand.vmem [shape: f32[288,32], index: 13, kind: input, shape index: {}]
  %s14 = inlined_call_operand.hbm [shape: f32[32,32], index: 14, kind: input, shape index: {}]
  %s15 = inlined_call_operand.vmem [shape: f32[32,9], index: 15, kind: input, shape index: {}]
  %s16 = inlined_call_operand.hbm [shape: f32[4,512], index: 16, kind: input, shape index: {}]
  %s17 = inlined_call_operand.hbm [shape: f32[8,32], index: 17, kind: input, shape index: {}]
  %s18 = inlined_call_operand.vmem [shape: f32[8,8], index: 18, kind: output, shape index: {}]
  %s19 = sld [smem:[#allocation0]]
  $region110: #{astgc_forward.1} parent=0
    _
  %s21 = ssub.s32 1, %s19
  %s22 = scalar_select 0, %s21, %s19
  $region1: #{astgc_forward.1} parent=0
    #allocation2 [shape = 'u8[4096]{0}', space=vmem, size = 0x1000, scoped, tag = 'input window, operand 5, single buffered']
    #allocation3 [shape = 's32[1]{0}', space=sflag, size = 0x4, scoped, tag = 'scoped memory for astgc_forward.1']
    #allocation4 [shape = 'u8[4096]{0}', space=vmem, size = 0x1000, scoped, tag = 'input window, operand 6, single buffered']
    #allocation5 [shape = 's32[1]{0}', space=sflag, size = 0x4, scoped, tag = 'scoped memory for astgc_forward.1']
    #allocation6 [shape = 'u8[8192]{0}', space=vmem, size = 0x2000, scoped, tag = 'input window, operand 7, single buffered']
    #allocation7 [shape = 'u8[49152]{0}', space=vmem, size = 0xc000, scoped, tag = 'input window, operand 8, single buffered']
    #allocation8 [shape = 's32[1]{0}', space=sflag, size = 0x4, scoped, tag = 'scoped memory for astgc_forward.1']
    #allocation9 [shape = 'u8[16384]{0}', space=vmem, size = 0x4000, scoped, tag = 'input window, operand 14, single buffered']
    #allocation10 [shape = 'u8[8192]{0}', space=vmem, size = 0x2000, scoped, tag = 'input window, operand 16, single buffered']
    #allocation11 [shape = 's32[1]{0}', space=sflag, size = 0x4, scoped, tag = 'scoped memory for astgc_forward.1']
    #allocation12 [shape = 'u8[4096]{0}', space=vmem, size = 0x1000, scoped, tag = 'input window, operand 17, single buffered']
    %23 = vsyncpa [#allocation3], 0
    %24 = vsyncpa [#allocation5], 0
    %25 = vsyncpa [#allocation8], 0
    %26 = vsyncpa [#allocation11], 0
    // Predicated region
    $region2: #{astgc_forward.1} parent=1 // pred_check
      _
    $region3: #{astgc_forward.1} parent=1 // pred_check_branch
      %28 = sbr.rel (0) target = $region5
    $region4: #{astgc_forward.1} parent=1 // pred_region
      _
    $region5: #{astgc_forward.1} parent=1 // pred_fallthru
      _
    // Predicated region
    $region6: #{astgc_forward.1} parent=1 // pred_check
      _
    $region7: #{astgc_forward.1} parent=1 // pred_check_branch
      %30 = sbr.rel (0) target = $region9
    $region8: #{astgc_forward.1} parent=1 // pred_region
      _
    $region9: #{astgc_forward.1} parent=1 // pred_fallthru
      _
    // Predicated region
    $region10: #{astgc_forward.1} parent=1 // pred_check
      _
    $region11: #{astgc_forward.1} parent=1 // pred_check_branch
      %32 = sbr.rel (0) target = $region13
    $region12: #{astgc_forward.1} parent=1 // pred_region
      _
    $region13: #{astgc_forward.1} parent=1 // pred_fallthru
      _
    // Predicated region
    $region14: #{astgc_forward.1} parent=1 // pred_check
      _
    $region15: #{astgc_forward.1} parent=1 // pred_check_branch
      %34 = sbr.rel (0) target = $region17
    $region16: #{astgc_forward.1} parent=1 // pred_region
      _
    $region17: #{astgc_forward.1} parent=1 // pred_fallthru
      _
    // Predicated region
    $region18: #{astgc_forward.1} parent=1 // pred_check
      _
    $region19: #{astgc_forward.1} parent=1 // pred_check_branch
      %36 = sbr.rel (0) target = $region21
    $region20: #{astgc_forward.1} parent=1 // pred_region
      _
    $region21: #{astgc_forward.1} parent=1 // pred_fallthru
      _
    // Predicated region
    $region22: #{astgc_forward.1} parent=1 // pred_check
      _
    $region23: #{astgc_forward.1} parent=1 // pred_check_branch
      %38 = sbr.rel (0) target = $region25
    $region24: #{astgc_forward.1} parent=1 // pred_region
      %s40 = ssub.s32 128, 128
      %41 = vsyncadd [#allocation3], %s40
      %s43 = sshll.u32 [#allocation2], 4
      %s44 = int_to_ptr.vmem [resolvable:$true] %s43
      %46 = dma.hbm_to_vmem [thread:$0]  %s5, 128, %s44, [#allocation3]
    $region25: #{astgc_forward.1} parent=1 // pred_fallthru
      _
    // Predicated region
    $region26: #{astgc_forward.1} parent=1 // pred_check
      _
    $region27: #{astgc_forward.1} parent=1 // pred_check_branch
      %48 = sbr.rel (0) target = $region29
    $region28: #{astgc_forward.1} parent=1 // pred_region
      %s50 = ssub.s32 128, 128
      %51 = vsyncadd [#allocation5], %s50
      %s53 = sshll.u32 [#allocation4], 4
      %s54 = int_to_ptr.vmem [resolvable:$true] %s53
      %56 = dma.hbm_to_vmem [thread:$0]  %s6, 128, %s54, [#allocation5]
    $region29: #{astgc_forward.1} parent=1 // pred_fallthru
      _
    // Predicated region
    $region30: #{astgc_forward.1} parent=1 // pred_check
      _
    $region31: #{astgc_forward.1} parent=1 // pred_check_branch
      %58 = sbr.rel (0) target = $region33
    $region32: #{astgc_forward.1} parent=1 // pred_region
      %s60 = ssub.s32 256, 256
      %61 = vsyncadd [#allocation5], %s60
      %s62 = sshll.u32 [#allocation6], 4
      %s63 = int_to_ptr.vmem [resolvable:$true] %s62
      %68 = dma.hbm_to_vmem [thread:$0]  %s7, 256, %s63, [#allocation5], 128, 128, 8
    $region33: #{astgc_forward.1} parent=1 // pred_fallthru
      _
    // Predicated region
    $region34: #{astgc_forward.1} parent=1 // pred_check
      _
    $region35: #{astgc_forward.1} parent=1 // pred_check_branch
      %70 = sbr.rel (0) target = $region37
    $region36: #{astgc_forward.1} parent=1 // pred_region
      %s72 = ssub.s32 1536, 1536
      %73 = vsyncadd [#allocation8], %s72
      %s74 = sshll.u32 [#allocation7], 4
      %s75 = int_to_ptr.vmem [resolvable:$true] %s74
      %80 = dma.hbm_to_vmem [thread:$0]  %s8, 1536, %s75, [#allocation8], 512, 512, 32
    $region37: #{astgc_forward.1} parent=1 // pred_fallthru
      _
    // Predicated region
    $region38: #{astgc_forward.1} parent=1 // pred_check
      _
    $region39: #{astgc_forward.1} parent=1 // pred_check_branch
      %82 = sbr.rel (0) target = $region41
    $region40: #{astgc_forward.1} parent=1 // pred_region
      _
    $region41: #{astgc_forward.1} parent=1 // pred_fallthru
      _
    // Predicated region
    $region42: #{astgc_forward.1} parent=1 // pred_check
      _
    $region43: #{astgc_forward.1} parent=1 // pred_check_branch
      %84 = sbr.rel (0) target = $region45
    $region44: #{astgc_forward.1} parent=1 // pred_region
      _
    $region45: #{astgc_forward.1} parent=1 // pred_fallthru
      _
    // Predicated region
    $region46: #{astgc_forward.1} parent=1 // pred_check
      _
    $region47: #{astgc_forward.1} parent=1 // pred_check_branch
      %86 = sbr.rel (0) target = $region49
    $region48: #{astgc_forward.1} parent=1 // pred_region
      _
    $region49: #{astgc_forward.1} parent=1 // pred_fallthru
      _
    // Predicated region
    $region50: #{astgc_forward.1} parent=1 // pred_check
      _
    $region51: #{astgc_forward.1} parent=1 // pred_check_branch
      %88 = sbr.rel (0) target = $region53
    $region52: #{astgc_forward.1} parent=1 // pred_region
      _
    $region53: #{astgc_forward.1} parent=1 // pred_fallthru
      _
    // Predicated region
    $region54: #{astgc_forward.1} parent=1 // pred_check
      _
    $region55: #{astgc_forward.1} parent=1 // pred_check_branch
      %90 = sbr.rel (0) target = $region57
    $region56: #{astgc_forward.1} parent=1 // pred_region
      _
    $region57: #{astgc_forward.1} parent=1 // pred_fallthru
      _
    // Predicated region
    $region58: #{astgc_forward.1} parent=1 // pred_check
      _
    $region59: #{astgc_forward.1} parent=1 // pred_check_branch
      %92 = sbr.rel (0) target = $region61
    $region60: #{astgc_forward.1} parent=1 // pred_region
      %s94 = ssub.s32 512, 512
      %95 = vsyncadd [#allocation8], %s94
      %s96 = sshll.u32 [#allocation9], 4
      %s97 = int_to_ptr.vmem [resolvable:$true] %s96
      %102 = dma.hbm_to_vmem [thread:$0]  %s14, 512, %s97, [#allocation8], 128, 128, 8
    $region61: #{astgc_forward.1} parent=1 // pred_fallthru
      _
    // Predicated region
    $region62: #{astgc_forward.1} parent=1 // pred_check
      _
    $region63: #{astgc_forward.1} parent=1 // pred_check_branch
      %104 = sbr.rel (0) target = $region65
    $region64: #{astgc_forward.1} parent=1 // pred_region
      _
    $region65: #{astgc_forward.1} parent=1 // pred_fallthru
      _
    // Predicated region
    $region66: #{astgc_forward.1} parent=1 // pred_check
      _
    $region67: #{astgc_forward.1} parent=1 // pred_check_branch
      %106 = sbr.rel (0) target = $region69
    $region68: #{astgc_forward.1} parent=1 // pred_region
      %s108 = ssub.s32 256, 256
      %109 = vsyncadd [#allocation11], %s108
      %s111 = sshll.u32 [#allocation10], 4
      %s112 = int_to_ptr.vmem [resolvable:$true] %s111
      %114 = dma.hbm_to_vmem [thread:$0]  %s16, 256, %s112, [#allocation11]
    $region69: #{astgc_forward.1} parent=1 // pred_fallthru
      _
    // Predicated region
    $region70: #{astgc_forward.1} parent=1 // pred_check
      _
    $region71: #{astgc_forward.1} parent=1 // pred_check_branch
      %116 = sbr.rel (0) target = $region73
    $region72: #{astgc_forward.1} parent=1 // pred_region
      %s118 = ssub.s32 128, 128
      %119 = vsyncadd [#allocation11], %s118
      %s121 = sshll.u32 [#allocation12], 4
      %s122 = int_to_ptr.vmem [resolvable:$true] %s121
      %124 = dma.hbm_to_vmem [thread:$0]  %s17, 128, %s122, [#allocation11]
    $region73: #{astgc_forward.1} parent=1 // pred_fallthru
      _
    // Predicated region
    $region74: #{astgc_forward.1} parent=1 // pred_check
      _
    $region75: #{astgc_forward.1} parent=1 // pred_check_branch
      %126 = sbr.rel (0) target = $region77
    $region76: #{astgc_forward.1} parent=1 // pred_region
      %127 = dma.done [#allocation3], 128
    $region77: #{astgc_forward.1} parent=1 // pred_fallthru
      _
    // Predicated region
    $region78: #{astgc_forward.1} parent=1 // pred_check
      _
    $region79: #{astgc_forward.1} parent=1 // pred_check_branch
      %129 = sbr.rel (0) target = $region81
    $region80: #{astgc_forward.1} parent=1 // pred_region
      %130 = dma.done [#allocation5], 128
    $region81: #{astgc_forward.1} parent=1 // pred_fallthru
      _
    // Predicated region
    $region82: #{astgc_forward.1} parent=1 // pred_check
      _
    $region83: #{astgc_forward.1} parent=1 // pred_check_branch
      %132 = sbr.rel (0) target = $region85
    $region84: #{astgc_forward.1} parent=1 // pred_region
      %133 = dma.done [#allocation5], 256
    $region85: #{astgc_forward.1} parent=1 // pred_fallthru
      _
    // Predicated region
    $region86: #{astgc_forward.1} parent=1 // pred_check
      _
    $region87: #{astgc_forward.1} parent=1 // pred_check_branch
      %135 = sbr.rel (0) target = $region89
    $region88: #{astgc_forward.1} parent=1 // pred_region
      %136 = dma.done [#allocation8], 1536
    $region89: #{astgc_forward.1} parent=1 // pred_fallthru
      _
    // Predicated region
    $region90: #{astgc_forward.1} parent=1 // pred_check
      _
    $region91: #{astgc_forward.1} parent=1 // pred_check_branch
      %138 = sbr.rel (0) target = $region93
    $region92: #{astgc_forward.1} parent=1 // pred_region
      %139 = dma.done [#allocation8], 512
    $region93: #{astgc_forward.1} parent=1 // pred_fallthru
      _
    // Predicated region
    $region94: #{astgc_forward.1} parent=1 // pred_check
      _
    $region95: #{astgc_forward.1} parent=1 // pred_check_branch
      %141 = sbr.rel (0) target = $region97
    $region96: #{astgc_forward.1} parent=1 // pred_region
      %142 = dma.done [#allocation11], 256
    $region97: #{astgc_forward.1} parent=1 // pred_fallthru
      _
    // Predicated region
    $region98: #{astgc_forward.1} parent=1 // pred_check
      _
    $region99: #{astgc_forward.1} parent=1 // pred_check_branch
      %144 = sbr.rel (0) target = $region101
    $region100: #{astgc_forward.1} parent=1 // pred_region
      %145 = dma.done [#allocation11], 128
    $region101: #{astgc_forward.1} parent=1 // pred_fallthru
      _
    %v146 = vld [vmem:[%s0] sm:$0x3]
    %v147 = vld [vmem:[#allocation6] sm:$0xff]
    %v148 = vld [vmem:[#allocation12] sm:$0x1]
    %v149 = vlaneseq
    %v150 = vshrl.u32 %v149, 7
    %v151 = vsub.s32 0, %v150
    %v152 = vrot.slane %v148, %v151
    %vm153 = vcmask 64512
    %v155 = vsel %vm153, %v146, 0
    %157 = vmatprep.subr.mxu0 0.0
    %158 = vmatpush1.msra.mxu0 %v147
    %159 = vmatprep.subr.mxu0 0.0
    %160 = vmatpush1.msra.mxu0 0.0
    %161 = vmatprep.subr.mxu0 0.0
    %162 = vmatpush1.msra.mxu0 0.0
    %163 = vmatprep.subr.mxu0 0.0
    %164 = vmatpush1.msra.mxu0 0.0
    %165 = vmatprep.subr.mxu0 0.0
    %166 = vmatpush1.msra.mxu0 0.0
    %167 = vmatprep.subr.mxu0 0.0
    %168 = vmatpush1.msra.mxu0 0.0
    %169 = vmatprep.subr.mxu0 0.0
    %170 = vmatpush1.msra.mxu0 0.0
    %171 = vmatprep.subr.mxu0 0.0
    %172 = vmatpush1.msra.mxu0 0.0
    %173 = vmatprep.subr.mxu0 0.0
    %174 = vmatpush1.msra.mxu0 0.0
    %175 = vmatprep.subr.mxu0 0.0
    %176 = vmatpush1.msra.mxu0 0.0
    %177 = vmatprep.subr.mxu0 0.0
    %178 = vmatpush1.msra.mxu0 0.0
    %179 = vmatprep.subr.mxu0 0.0
    %180 = vmatpush1.msra.mxu0 0.0
    %181 = vmatprep.subr.mxu0 0.0
    %182 = vmatpush1.msra.mxu0 0.0
    %183 = vmatprep.subr.mxu0 0.0
    %184 = vmatpush1.msra.mxu0 0.0
    %185 = vmatprep.subr.mxu0 0.0
    %186 = vmatpush1.msra.mxu0 0.0
    %187 = vmatprep.subr.mxu0 0.0
    %188 = vmatpush1.msra.mxu0 0.0
    %189 = vmatprep.subr.mxu0 0.0
    %190 = vmatpush1.msra.mxu0 0.0
    %191 = vmatprep.subr.mxu0 0.0
    %192 = vmatpush1.msra.mxu0 0.0
    %193 = vmatprep.subr.mxu0 0.0
    %194 = vmatpush1.msra.mxu0 0.0
    %195 = vmatprep.subr.mxu0 0.0
    %196 = vmatpush1.msra.mxu0 0.0
    %197 = vmatprep.subr.mxu0 0.0
    %198 = vmatpush1.msra.mxu0 0.0
    %199 = vmatprep.subr.mxu0 0.0
    %200 = vmatpush1.msra.mxu0 0.0
    %201 = vmatprep.subr.mxu0 0.0
    %202 = vmatpush1.msra.mxu0 0.0
    %203 = vmatprep.subr.mxu0 0.0
    %204 = vmatpush1.msra.mxu0 0.0
    %205 = vmatprep.subr.mxu0 0.0
    %206 = vmatpush1.msra.mxu0 0.0
    %207 = vmatprep.subr.mxu0 0.0
    %208 = vmatpush1.msra.mxu0 0.0
    %209 = vmatprep.subr.mxu0 0.0
    %210 = vmatpush1.msra.mxu0 0.0
    %211 = vmatprep.subr.mxu0 0.0
    %212 = vmatpush1.msra.mxu0 0.0
    %213 = vmatprep.subr.mxu0 0.0
    %214 = vmatpush1.msra.mxu0 0.0
    %215 = vmatprep.subr.mxu0 0.0
    %216 = vmatpush1.msra.mxu0 0.0
    %217 = vmatprep.subr.mxu0 0.0
    %218 = vmatpush1.msra.mxu0 0.0
    %219 = vmatprep.subr.mxu0 0.0
    %220 = vmatpush1.msra.mxu0 0.0
    %221 = vmatprep.mubr.f32.mxu0 0.0
    %222 = vmatmul.mubr.f32.gmra.mrb[0].mxu0 %v155
    %v223 = vpop.f32.mrb[0].mxu0
    %v224 = vadd.f32 %v152, %v223
    %v225 = vpop.f32.mrb[0].mxu0
    %226 = vdwg.mxu0
    %v227 = vmax.f32 %v224, 0.0
    %v228 = vld [vmem:[%s1] sm:$0x3]
    %v229 = vld [vmem:[#allocation7] sm:$0xff]
    %v230 = vld [vmem:[#allocation7 + $0x8] sm:$0xff]
    %v231 = vld [vmem:[#allocation7 + $0x10] sm:$0xff]
    %v232 = vld [vmem:[#allocation7 + $0x18] sm:$0xff]
    %v233 = vld [vmem:[#allocation7 + $0x20] sm:$0xff]
    %v234 = vld [vmem:[#allocation7 + $0x28] sm:$0xff]
    %v235 = vld [vmem:[#allocation7 + $0x30] sm:$0xff]
    %v236 = vld [vmem:[#allocation7 + $0x38] sm:$0xff]
    %v237 = vld [vmem:[#allocation7 + $0x40] sm:$0xff]
    %v238 = vld [vmem:[#allocation7 + $0x48] sm:$0xff]
    %v239 = vld [vmem:[#allocation7 + $0x50] sm:$0xff]
    %v240 = vld [vmem:[#allocation7 + $0x58] sm:$0xff]
    %v241 = vld [vmem:[#allocation10] ss:$4 sm:$0xf]
    %v243 = vlaneseq
    %v244 = vshrl.u32 %v243, 7
    %v245 = vsub.s32 0, %v244
    %v246 = vrot.slane %v241, %v245
    %v247 = vlaneseq
    %v248 = vshrl.u32 %v247, 7
    %v249 = vsub.s32 1, %v248
    %v250 = vrot.slane %v241, %v249
    %v251 = vlaneseq
    %v252 = vshrl.u32 %v251, 7
    %v253 = vsub.s32 2, %v252
    %v254 = vrot.slane %v241, %v253
    %v255 = vlaneseq
    %v256 = vshrl.u32 %v255, 7
    %v257 = vsub.s32 3, %v256
    %v258 = vrot.slane %v241, %v257
    %vm263 = vcmask 195584
    %v265 = vsel %vm263, %v228, 0
    %267 = vmatprep.subr.mxu0 %v230
    %268 = vmatpush1.msra.mxu0 %v229
    %269 = vmatprep.subr.mxu0 %v234
    %270 = vmatpush1.msra.mxu0 %v233
    %271 = vmatprep.subr.mxu0 %v238
    %272 = vmatpush1.msra.mxu0 %v237
    %273 = vmatprep.subr.mxu0 0.0
    %274 = vmatpush1.msra.mxu0 0.0
    %275 = vmatprep.subr.mxu0 0.0
    %276 = vmatpush1.msra.mxu0 0.0
    %277 = vmatprep.subr.mxu0 0.0
    %278 = vmatpush1.msra.mxu0 0.0
    %279 = vmatprep.subr.mxu0 0.0
    %280 = vmatpush1.msra.mxu0 0.0
    %281 = vmatprep.subr.mxu0 0.0
    %282 = vmatpush1.msra.mxu0 0.0
    %283 = vmatprep.subr.mxu0 0.0
    %284 = vmatpush1.msra.mxu0 0.0
    %285 = vmatprep.subr.mxu0 0.0
    %286 = vmatpush1.msra.mxu0 0.0
    %287 = vmatprep.subr.mxu0 0.0
    %288 = vmatpush1.msra.mxu0 0.0
    %289 = vmatprep.subr.mxu0 0.0
    %290 = vmatpush1.msra.mxu0 0.0
    %291 = vmatprep.subr.mxu0 0.0
    %292 = vmatpush1.msra.mxu0 0.0
    %293 = vmatprep.subr.mxu0 0.0
    %294 = vmatpush1.msra.mxu0 0.0
    %295 = vmatprep.subr.mxu0 0.0
    %296 = vmatpush1.msra.mxu0 0.0
    %297 = vmatprep.subr.mxu0 0.0
    %298 = vmatpush1.msra.mxu0 0.0
    %299 = vmatprep.subr.mxu0 0.0
    %300 = vmatpush1.msra.mxu0 0.0
    %301 = vmatprep.subr.mxu0 0.0
    %302 = vmatpush1.msra.mxu0 0.0
    %303 = vmatprep.subr.mxu0 0.0
    %304 = vmatpush1.msra.mxu0 0.0
    %305 = vmatprep.subr.mxu0 0.0
    %306 = vmatpush1.msra.mxu0 0.0
    %307 = vmatprep.subr.mxu0 0.0
    %308 = vmatpush1.msra.mxu0 0.0
    %309 = vmatprep.subr.mxu0 0.0
    %310 = vmatpush1.msra.mxu0 0.0
    %311 = vmatprep.subr.mxu0 0.0
    %312 = vmatpush1.msra.mxu0 0.0
    %313 = vmatprep.subr.mxu0 0.0
    %314 = vmatpush1.msra.mxu0 0.0
    %315 = vmatprep.subr.mxu0 0.0
    %316 = vmatpush1.msra.mxu0 0.0
    %317 = vmatprep.subr.mxu0 0.0
    %318 = vmatpush1.msra.mxu0 0.0
    %319 = vmatprep.subr.mxu0 0.0
    %320 = vmatpush1.msra.mxu0 0.0
    %321 = vmatprep.subr.mxu0 0.0
    %322 = vmatpush1.msra.mxu0 0.0
    %323 = vmatprep.subr.mxu0 0.0
    %324 = vmatpush1.msra.mxu0 0.0
    %325 = vmatprep.subr.mxu0 0.0
    %326 = vmatpush1.msra.mxu0 0.0
    %327 = vmatprep.subr.mxu0 0.0
    %328 = vmatpush1.msra.mxu0 0.0
    %329 = vmatprep.subr.mxu0 0.0
    %330 = vmatpush1.msra.mxu0 0.0
    %331 = vmatprep.mubr.f32.mxu0 0.0
    %332 = vmatmul.mubr.f32.gmra.mrb[0].mxu0 %v265
    %v333 = vpop.f32.mrb[0].mxu0
    %v334 = vadd.f32 %v246, %v333
    %v335 = vpop.f32.mrb[0].mxu0
    %v336 = vadd.f32 %v250, %v335
    %337 = vdwg.mxu0
    %338 = vmatprep.subr.mxu0 %v232
    %339 = vmatpush1.msra.mxu0 %v231
    %340 = vmatprep.subr.mxu0 %v236
    %341 = vmatpush1.msra.mxu0 %v235
    %342 = vmatprep.subr.mxu0 %v240
    %343 = vmatpush1.msra.mxu0 %v239
    %344 = vmatprep.subr.mxu0 0.0
    %345 = vmatpush1.msra.mxu0 0.0
    %346 = vmatprep.subr.mxu0 0.0
    %347 = vmatpush1.msra.mxu0 0.0
    %348 = vmatprep.subr.mxu0 0.0
    %349 = vmatpush1.msra.mxu0 0.0
    %350 = vmatprep.subr.mxu0 0.0
    %351 = vmatpush1.msra.mxu0 0.0
    %352 = vmatprep.subr.mxu0 0.0
    %353 = vmatpush1.msra.mxu0 0.0
    %354 = vmatprep.subr.mxu0 0.0
    %355 = vmatpush1.msra.mxu0 0.0
    %356 = vmatprep.subr.mxu0 0.0
    %357 = vmatpush1.msra.mxu0 0.0
    %358 = vmatprep.subr.mxu0 0.0
    %359 = vmatpush1.msra.mxu0 0.0
    %360 = vmatprep.subr.mxu0 0.0
    %361 = vmatpush1.msra.mxu0 0.0
    %362 = vmatprep.subr.mxu0 0.0
    %363 = vmatpush1.msra.mxu0 0.0
    %364 = vmatprep.subr.mxu0 0.0
    %365 = vmatpush1.msra.mxu0 0.0
    %366 = vmatprep.subr.mxu0 0.0
    %367 = vmatpush1.msra.mxu0 0.0
    %368 = vmatprep.subr.mxu0 0.0
    %369 = vmatpush1.msra.mxu0 0.0
    %370 = vmatprep.subr.mxu0 0.0
    %371 = vmatpush1.msra.mxu0 0.0
    %372 = vmatprep.subr.mxu0 0.0
    %373 = vmatpush1.msra.mxu0 0.0
    %374 = vmatprep.subr.mxu0 0.0
    %375 = vmatpush1.msra.mxu0 0.0
    %376 = vmatprep.subr.mxu0 0.0
    %377 = vmatpush1.msra.mxu0 0.0
    %378 = vmatprep.subr.mxu0 0.0
    %379 = vmatpush1.msra.mxu0 0.0
    %380 = vmatprep.subr.mxu0 0.0
    %381 = vmatpush1.msra.mxu0 0.0
    %382 = vmatprep.subr.mxu0 0.0
    %383 = vmatpush1.msra.mxu0 0.0
    %384 = vmatprep.subr.mxu0 0.0
    %385 = vmatpush1.msra.mxu0 0.0
    %386 = vmatprep.subr.mxu0 0.0
    %387 = vmatpush1.msra.mxu0 0.0
    %388 = vmatprep.subr.mxu0 0.0
    %389 = vmatpush1.msra.mxu0 0.0
    %390 = vmatprep.subr.mxu0 0.0
    %391 = vmatpush1.msra.mxu0 0.0
    %392 = vmatprep.subr.mxu0 0.0
    %393 = vmatpush1.msra.mxu0 0.0
    %394 = vmatprep.subr.mxu0 0.0
    %395 = vmatpush1.msra.mxu0 0.0
    %396 = vmatprep.subr.mxu0 0.0
    %397 = vmatpush1.msra.mxu0 0.0
    %398 = vmatprep.subr.mxu0 0.0
    %399 = vmatpush1.msra.mxu0 0.0
    %400 = vmatprep.subr.mxu0 0.0
    %401 = vmatpush1.msra.mxu0 0.0
    %402 = vmatprep.mubr.f32.mxu0 0.0
    %403 = vmatmul.mubr.f32.gmra.mrb[0].mxu0 %v265
    %v404 = vpop.f32.mrb[0].mxu0
    %v405 = vadd.f32 %v254, %v404
    %v406 = vpop.f32.mrb[0].mxu0
    %v407 = vadd.f32 %v258, %v406
    %408 = vdwg.mxu0
    %v409 = vmax.f32 %v334, 0.0
    %v410 = vmax.f32 %v336, 0.0
    %v411 = vld [vmem:[%s9] sm:$0xff]
    %v412 = vld [vmem:[%s9 + $0x8] sm:$0xff]
    %v413 = vld [vmem:[%s9 + $0x10] sm:$0xff]
    %v414 = vld [vmem:[%s9 + $0x18] sm:$0xff]
    %v415 = vld [vmem:[%s9 + $0x20] sm:$0xff]
    %v416 = vld [vmem:[%s9 + $0x28] sm:$0xff]
    %v417 = vld [vmem:[%s9 + $0x30] sm:$0xff]
    %v418 = vld [vmem:[%s9 + $0x38] sm:$0xff]
    %v419 = vld [vmem:[%s9 + $0x40] sm:$0xff]
    %v420 = vld [vmem:[%s9 + $0x48] sm:$0xff]
    %v421 = vld [vmem:[%s9 + $0x50] sm:$0xff]
    %v422 = vld [vmem:[%s9 + $0x58] sm:$0xff]
    %v423 = vld [vmem:[%s9 + $0x60] sm:$0xff]
    %v424 = vld [vmem:[%s9 + $0x68] sm:$0xff]
    %v425 = vld [vmem:[%s9 + $0x70] sm:$0xff]
    %v426 = vld [vmem:[%s9 + $0x78] sm:$0xff]
    %v427 = vld [vmem:[%s9 + $0x80] sm:$0xff]
    %v428 = vld [vmem:[%s9 + $0x88] sm:$0xff]
    %v429 = vld [vmem:[%s9 + $0x90] sm:$0xff]
    %v430 = vld [vmem:[%s9 + $0x98] sm:$0xff]
    %v431 = vld [vmem:[%s9 + $0xa0] sm:$0xff]
    %v432 = vld [vmem:[%s9 + $0xa8] sm:$0xff]
    %v433 = vld [vmem:[%s9 + $0xb0] sm:$0xff]
    %v434 = vld [vmem:[%s9 + $0xb8] sm:$0xff]
    %v435 = vld [vmem:[%s9 + $0xc0] sm:$0xff]
    %v436 = vld [vmem:[%s9 + $0xc8] sm:$0xff]
    %v437 = vld [vmem:[%s9 + $0xd0] sm:$0xff]
    %v438 = vld [vmem:[%s9 + $0xd8] sm:$0xff]
    %v439 = vld [vmem:[%s9 + $0xe0] sm:$0xff]
    %v440 = vld [vmem:[%s9 + $0xe8] sm:$0xff]
    %v441 = vld [vmem:[%s9 + $0xf0] sm:$0xff]
    %v442 = vld [vmem:[%s9 + $0xf8] sm:$0xff]
    %v443 = vld [vmem:[%s9 + $0x100] sm:$0xff]
    %v444 = vld [vmem:[%s9 + $0x108] sm:$0xff]
    %v445 = vld [vmem:[%s9 + $0x110] sm:$0xff]
    %v446 = vld [vmem:[%s9 + $0x118] sm:$0xff]
    %v447 = vld [vmem:[%s9 + $0x120] sm:$0xff]
    %v448 = vld [vmem:[%s9 + $0x128] sm:$0xff]
    %v449 = vld [vmem:[%s9 + $0x130] sm:$0xff]
    %v450 = vld [vmem:[%s9 + $0x138] sm:$0xff]
    %v451 = vld [vmem:[%s9 + $0x140] sm:$0xff]
    %v452 = vld [vmem:[%s9 + $0x148] sm:$0xff]
    %v453 = vld [vmem:[%s9 + $0x150] sm:$0xff]
    %v454 = vld [vmem:[%s9 + $0x158] sm:$0xff]
    %v455 = vld [vmem:[%s9 + $0x160] sm:$0xff]
    %v456 = vld [vmem:[%s9 + $0x168] sm:$0xff]
    %v457 = vld [vmem:[%s9 + $0x170] sm:$0xff]
    %v458 = vld [vmem:[%s9 + $0x178] sm:$0xff]
    %v459 = vld [vmem:[%s9 + $0x180] sm:$0xff]
    %v460 = vld [vmem:[%s9 + $0x188] sm:$0xff]
    %v461 = vld [vmem:[%s9 + $0x190] sm:$0xff]
    %v462 = vld [vmem:[%s9 + $0x198] sm:$0xff]
    %v463 = vld [vmem:[%s9 + $0x1a0] sm:$0xff]
    %v464 = vld [vmem:[%s9 + $0x1a8] sm:$0xff]
    %v465 = vld [vmem:[%s9 + $0x1b0] sm:$0xff]
    %v466 = vld [vmem:[%s9 + $0x1b8] sm:$0xff]
    %v467 = vld [vmem:[%s9 + $0x1c0] sm:$0xff]
    %v468 = vld [vmem:[%s9 + $0x1c8] sm:$0xff]
    %v469 = vld [vmem:[%s9 + $0x1d0] sm:$0xff]
    %v470 = vld [vmem:[%s9 + $0x1d8] sm:$0xff]
    %v471 = vld [vmem:[%s9 + $0x1e0] sm:$0xff]
    %v472 = vld [vmem:[%s9 + $0x1e8] sm:$0xff]
    %v473 = vld [vmem:[%s9 + $0x1f0] sm:$0xff]
    %v474 = vld [vmem:[%s9 + $0x1f8] sm:$0xff]
    %s475 = scalar_lea.vmem [#allocation10], 1
    %v476 = vld [vmem:[%s475] ss:$4 sm:$0x3]
    %v478 = vlaneseq
    %v479 = vshrl.u32 %v478, 7
    %v480 = vsub.s32 0, %v479
    %v481 = vrot.slane %v476, %v480
    %v482 = vlaneseq
    %v483 = vshrl.u32 %v482, 7
    %v484 = vsub.s32 1, %v483
    %v485 = vrot.slane %v476, %v484
    %488 = vmatprep.subr.mxu0 %v412
    %489 = vmatpush1.msra.mxu0 %v411
    %490 = vmatprep.subr.mxu0 %v414
    %491 = vmatpush1.msra.mxu0 %v413
    %492 = vmatprep.subr.mxu0 %v416
    %493 = vmatpush1.msra.mxu0 %v415
    %494 = vmatprep.subr.mxu0 %v418
    %495 = vmatpush1.msra.mxu0 %v417
    %496 = vmatprep.subr.mxu0 %v420
    %497 = vmatpush1.msra.mxu0 %v419
    %498 = vmatprep.subr.mxu0 %v422
    %499 = vmatpush1.msra.mxu0 %v421
    %500 = vmatprep.subr.mxu0 %v424
    %501 = vmatpush1.msra.mxu0 %v423
    %502 = vmatprep.subr.mxu0 %v426
    %503 = vmatpush1.msra.mxu0 %v425
    %504 = vmatprep.subr.mxu0 %v428
    %505 = vmatpush1.msra.mxu0 %v427
    %506 = vmatprep.subr.mxu0 %v430
    %507 = vmatpush1.msra.mxu0 %v429
    %508 = vmatprep.subr.mxu0 %v432
    %509 = vmatpush1.msra.mxu0 %v431
    %510 = vmatprep.subr.mxu0 %v434
    %511 = vmatpush1.msra.mxu0 %v433
    %512 = vmatprep.subr.mxu0 %v436
    %513 = vmatpush1.msra.mxu0 %v435
    %514 = vmatprep.subr.mxu0 %v438
    %515 = vmatpush1.msra.mxu0 %v437
    %516 = vmatprep.subr.mxu0 %v440
    %517 = vmatpush1.msra.mxu0 %v439
    %518 = vmatprep.subr.mxu0 %v442
    %519 = vmatpush1.msra.mxu0 %v441
    %520 = vmatprep.subr.mxu0 %v444
    %521 = vmatpush1.msra.mxu0 %v443
    %522 = vmatprep.subr.mxu0 %v446
    %523 = vmatpush1.msra.mxu0 %v445
    %524 = vmatprep.subr.mxu0 %v448
    %525 = vmatpush1.msra.mxu0 %v447
    %526 = vmatprep.subr.mxu0 %v450
    %527 = vmatpush1.msra.mxu0 %v449
    %528 = vmatprep.subr.mxu0 %v452
    %529 = vmatpush1.msra.mxu0 %v451
    %530 = vmatprep.subr.mxu0 %v454
    %531 = vmatpush1.msra.mxu0 %v453
    %532 = vmatprep.subr.mxu0 %v456
    %533 = vmatpush1.msra.mxu0 %v455
    %534 = vmatprep.subr.mxu0 %v458
    %535 = vmatpush1.msra.mxu0 %v457
    %536 = vmatprep.subr.mxu0 %v460
    %537 = vmatpush1.msra.mxu0 %v459
    %538 = vmatprep.subr.mxu0 %v462
    %539 = vmatpush1.msra.mxu0 %v461
    %540 = vmatprep.subr.mxu0 %v464
    %541 = vmatpush1.msra.mxu0 %v463
    %542 = vmatprep.subr.mxu0 %v466
    %543 = vmatpush1.msra.mxu0 %v465
    %544 = vmatprep.subr.mxu0 %v468
    %545 = vmatpush1.msra.mxu0 %v467
    %546 = vmatprep.subr.mxu0 %v470
    %547 = vmatpush1.msra.mxu0 %v469
    %548 = vmatprep.subr.mxu0 %v472
    %549 = vmatpush1.msra.mxu0 %v471
    %550 = vmatprep.subr.mxu0 %v474
    %551 = vmatpush1.msra.mxu0 %v473
    %552 = vmatprep.mubr.f32.mxu0 %v410
    %553 = vmatmul.mubr.f32.gmra.mrb[0].mxu0 %v409
    %v554 = vpop.f32.mrb[0].mxu0
    %v555 = vadd.f32 %v481, %v554
    %v556 = vpop.f32.mrb[0].mxu0
    %v557 = vadd.f32 %v485, %v556
    %558 = vdwg.mxu0
    %v559 = vmax.f32 %v555, 0.0
    %v560 = vmax.f32 %v557, 0.0
    %v561 = vadd.f32 %v559, %v405
    %v562 = vadd.f32 %v560, %v407
    %v563 = vmax.f32 %v561, 0.0
    %v564 = vmax.f32 %v562, 0.0
    %v565 = vld [vmem:[%s10] sm:$0xff]
    %v566 = vld [vmem:[%s10 + $0x8] sm:$0xff]
    %v567 = vld [vmem:[%s10 + $0x10] sm:$0xff]
    %v568 = vld [vmem:[%s10 + $0x18] sm:$0xff]
    %v569 = vld [vmem:[%s10 + $0x20] sm:$0xff]
    %v570 = vld [vmem:[%s10 + $0x28] sm:$0xff]
    %v571 = vld [vmem:[%s10 + $0x30] sm:$0xff]
    %v572 = vld [vmem:[%s10 + $0x38] sm:$0xff]
    %v573 = vld [vmem:[%s10 + $0x40] sm:$0xff]
    %v574 = vld [vmem:[%s10 + $0x48] sm:$0xff]
    %v575 = vld [vmem:[%s10 + $0x50] sm:$0xff]
    %v576 = vld [vmem:[%s10 + $0x58] sm:$0xff]
    %v577 = vld [vmem:[%s10 + $0x60] sm:$0xff]
    %v578 = vld [vmem:[%s10 + $0x68] sm:$0xff]
    %v579 = vld [vmem:[%s10 + $0x70] sm:$0xff]
    %v580 = vld [vmem:[%s10 + $0x78] sm:$0xff]
    %v581 = vld [vmem:[%s10 + $0x80] sm:$0xff]
    %v582 = vld [vmem:[%s10 + $0x88] sm:$0xff]
    %v583 = vld [vmem:[%s10 + $0x90] sm:$0xff]
    %v584 = vld [vmem:[%s10 + $0x98] sm:$0xff]
    %v585 = vld [vmem:[%s10 + $0xa0] sm:$0xff]
    %v586 = vld [vmem:[%s10 + $0xa8] sm:$0xff]
    %v587 = vld [vmem:[%s10 + $0xb0] sm:$0xff]
    %v588 = vld [vmem:[%s10 + $0xb8] sm:$0xff]
    %v589 = vld [vmem:[%s10 + $0xc0] sm:$0xff]
    %v590 = vld [vmem:[%s10 + $0xc8] sm:$0xff]
    %v591 = vld [vmem:[%s10 + $0xd0] sm:$0xff]
    %v592 = vld [vmem:[%s10 + $0xd8] sm:$0xff]
    %v593 = vld [vmem:[%s10 + $0xe0] sm:$0xff]
    %v594 = vld [vmem:[%s10 + $0xe8] sm:$0xff]
    %v595 = vld [vmem:[%s10 + $0xf0] sm:$0xff]
    %v596 = vld [vmem:[%s10 + $0xf8] sm:$0xff]
    %v597 = vld [vmem:[%s10 + $0x100] sm:$0xff]
    %v598 = vld [vmem:[%s10 + $0x108] sm:$0xff]
    %v599 = vld [vmem:[%s10 + $0x110] sm:$0xff]
    %v600 = vld [vmem:[%s10 + $0x118] sm:$0xff]
    %601 = vmatprep.subr.mxu0 0.0
    %602 = vmatpush1.msra.mxu0 %v569
    %603 = vmatprep.subr.mxu0 0.0
    %604 = vmatpush1.msra.mxu0 %v570
    %605 = vmatprep.subr.mxu0 0.0
    %606 = vmatpush1.msra.mxu0 %v571
    %607 = vmatprep.subr.mxu0 0.0
    %608 = vmatpush1.msra.mxu0 %v572
    %609 = vmatprep.subr.mxu0 0.0
    %610 = vmatpush1.msra.mxu0 %v573
    %611 = vmatprep.subr.mxu0 0.0
    %612 = vmatpush1.msra.mxu0 %v574
    %613 = vmatprep.subr.mxu0 0.0
    %614 = vmatpush1.msra.mxu0 %v575
    %615 = vmatprep.subr.mxu0 0.0
    %616 = vmatpush1.msra.mxu0 %v576
    %617 = vmatprep.subr.mxu0 0.0
    %618 = vmatpush1.msra.mxu0 %v577
    %619 = vmatprep.subr.mxu0 0.0
    %620 = vmatpush1.msra.mxu0 %v578
    %621 = vmatprep.subr.mxu0 0.0
    %622 = vmatpush1.msra.mxu0 %v579
    %623 = vmatprep.subr.mxu0 0.0
    %624 = vmatpush1.msra.mxu0 %v580
    %625 = vmatprep.subr.mxu0 0.0
    %626 = vmatpush1.msra.mxu0 %v581
    %627 = vmatprep.subr.mxu0 0.0
    %628 = vmatpush1.msra.mxu0 %v582
    %629 = vmatprep.subr.mxu0 0.0
    %630 = vmatpush1.msra.mxu0 %v583
    %631 = vmatprep.subr.mxu0 0.0
    %632 = vmatpush1.msra.mxu0 %v584
    %633 = vmatprep.subr.mxu0 0.0
    %634 = vmatpush1.msra.mxu0 %v585
    %635 = vmatprep.subr.mxu0 0.0
    %636 = vmatpush1.msra.mxu0 %v586
    %637 = vmatprep.subr.mxu0 0.0
    %638 = vmatpush1.msra.mxu0 %v587
    %639 = vmatprep.subr.mxu0 0.0
    %640 = vmatpush1.msra.mxu0 %v588
    %641 = vmatprep.subr.mxu0 0.0
    %642 = vmatpush1.msra.mxu0 %v589
    %643 = vmatprep.subr.mxu0 0.0
    %644 = vmatpush1.msra.mxu0 %v590
    %645 = vmatprep.subr.mxu0 0.0
    %646 = vmatpush1.msra.mxu0 %v591
    %647 = vmatprep.subr.mxu0 0.0
    %648 = vmatpush1.msra.mxu0 %v592
    %649 = vmatprep.subr.mxu0 0.0
    %650 = vmatpush1.msra.mxu0 %v593
    %651 = vmatprep.subr.mxu0 0.0
    %652 = vmatpush1.msra.mxu0 %v594
    %653 = vmatprep.subr.mxu0 0.0
    %654 = vmatpush1.msra.mxu0 %v595
    %655 = vmatprep.subr.mxu0 0.0
    %656 = vmatpush1.msra.mxu0 %v596
    %657 = vmatprep.subr.mxu0 0.0
    %658 = vmatpush1.msra.mxu0 %v597
    %659 = vmatprep.subr.mxu0 0.0
    %660 = vmatpush1.msra.mxu0 %v598
    %661 = vmatprep.subr.mxu0 0.0
    %662 = vmatpush1.msra.mxu0 %v599
    %663 = vmatprep.subr.mxu0 0.0
    %664 = vmatpush1.msra.mxu0 %v600
    %665 = vmatprep.mubr.f32.mxu0 %v564
    %666 = vmatmul.mubr.f32.gmra.mrb[0].mxu0 %v563
    %v667 = vpop.f32.mrb[0].mxu0
    %v668 = vadd.f32 0.0, %v667
    %v669 = vpop.f32.mrb[0].mxu0
    %670 = vdwg.mxu0
    %vm671 = vcmask 261120
    %v673 = vsel %vm671, %v227, 0
    %675 = vmatprep.subr.mxu0 0.0
    %676 = vmatpush1.msra.mxu0 %v565
    %677 = vmatprep.subr.mxu0 0.0
    %678 = vmatpush1.msra.mxu0 %v566
    %679 = vmatprep.subr.mxu0 0.0
    %680 = vmatpush1.msra.mxu0 %v567
    %681 = vmatprep.subr.mxu0 0.0
    %682 = vmatpush1.msra.mxu0 %v568
    %683 = vmatprep.subr.mxu0 0.0
    %684 = vmatpush1.msra.mxu0 0.0
    %685 = vmatprep.subr.mxu0 0.0
    %686 = vmatpush1.msra.mxu0 0.0
    %687 = vmatprep.subr.mxu0 0.0
    %688 = vmatpush1.msra.mxu0 0.0
    %689 = vmatprep.subr.mxu0 0.0
    %690 = vmatpush1.msra.mxu0 0.0
    %691 = vmatprep.subr.mxu0 0.0
    %692 = vmatpush1.msra.mxu0 0.0
    %693 = vmatprep.subr.mxu0 0.0
    %694 = vmatpush1.msra.mxu0 0.0
    %695 = vmatprep.subr.mxu0 0.0
    %696 = vmatpush1.msra.mxu0 0.0
    %697 = vmatprep.subr.mxu0 0.0
    %698 = vmatpush1.msra.mxu0 0.0
    %699 = vmatprep.subr.mxu0 0.0
    %700 = vmatpush1.msra.mxu0 0.0
    %701 = vmatprep.subr.mxu0 0.0
    %702 = vmatpush1.msra.mxu0 0.0
    %703 = vmatprep.subr.mxu0 0.0
    %704 = vmatpush1.msra.mxu0 0.0
    %705 = vmatprep.subr.mxu0 0.0
    %706 = vmatpush1.msra.mxu0 0.0
    %707 = vmatprep.subr.mxu0 0.0
    %708 = vmatpush1.msra.mxu0 0.0
    %709 = vmatprep.subr.mxu0 0.0
    %710 = vmatpush1.msra.mxu0 0.0
    %711 = vmatprep.subr.mxu0 0.0
    %712 = vmatpush1.msra.mxu0 0.0
    %713 = vmatprep.subr.mxu0 0.0
    %714 = vmatpush1.msra.mxu0 0.0
    %715 = vmatprep.subr.mxu0 0.0
    %716 = vmatpush1.msra.mxu0 0.0
    %717 = vmatprep.subr.mxu0 0.0
    %718 = vmatpush1.msra.mxu0 0.0
    %719 = vmatprep.subr.mxu0 0.0
    %720 = vmatpush1.msra.mxu0 0.0
    %721 = vmatprep.subr.mxu0 0.0
    %722 = vmatpush1.msra.mxu0 0.0
    %723 = vmatprep.subr.mxu0 0.0
    %724 = vmatpush1.msra.mxu0 0.0
    %725 = vmatprep.subr.mxu0 0.0
    %726 = vmatpush1.msra.mxu0 0.0
    %727 = vmatprep.subr.mxu0 0.0
    %728 = vmatpush1.msra.mxu0 0.0
    %729 = vmatprep.subr.mxu0 0.0
    %730 = vmatpush1.msra.mxu0 0.0
    %731 = vmatprep.subr.mxu0 0.0
    %732 = vmatpush1.msra.mxu0 0.0
    %733 = vmatprep.subr.mxu0 0.0
    %734 = vmatpush1.msra.mxu0 0.0
    %735 = vmatprep.subr.mxu0 0.0
    %736 = vmatpush1.msra.mxu0 0.0
    %737 = vmatprep.subr.mxu0 0.0
    %738 = vmatpush1.msra.mxu0 0.0
    %739 = vmatprep.mubr.f32.mxu0 0.0
    %740 = vmatmul.mubr.f32.gmra.mrb[0].mxu0 %v673
    %v741 = vpop.f32.mrb[0].mxu0
    %v742 = vadd.f32 %v668, %v741
    %v743 = vpop.f32.mrb[0].mxu0
    %744 = vdwg.mxu0
    %v745 = vld [vmem:[#allocation12 + $0x2] sm:$0x1]
    %v746 = vlaneseq
    %v747 = vshrl.u32 %v746, 7
    %v748 = vsub.s32 0, %v747
    %v749 = vrot.slane %v745, %v748
    %v750 = vadd.f32 %v742, %v749
    %v751 = vmax.f32 %v750, 0.0
    %v752 = vld [vmem:[%s4] sm:$0x3f]
    %v753 = vld [vmem:[%s2] sm:$0x3f]
    %v754 = vld [vmem:[#allocation6 + $0x8] sm:$0xff]
    %v756 = vsel %vm153, %v753, 0
    %758 = vmatprep.subr.mxu0 0.0
    %759 = vmatpush1.msra.mxu0 %v754
    %760 = vmatprep.subr.mxu0 0.0
    %761 = vmatpush1.msra.mxu0 0.0
    %762 = vmatprep.subr.mxu0 0.0
    %763 = vmatpush1.msra.mxu0 0.0
    %764 = vmatprep.subr.mxu0 0.0
    %765 = vmatpush1.msra.mxu0 0.0
    %766 = vmatprep.subr.mxu0 0.0
    %767 = vmatpush1.msra.mxu0 0.0
    %768 = vmatprep.subr.mxu0 0.0
    %769 = vmatpush1.msra.mxu0 0.0
    %770 = vmatprep.subr.mxu0 0.0
    %771 = vmatpush1.msra.mxu0 0.0
    %772 = vmatprep.subr.mxu0 0.0
    %773 = vmatpush1.msra.mxu0 0.0
    %774 = vmatprep.subr.mxu0 0.0
    %775 = vmatpush1.msra.mxu0 0.0
    %776 = vmatprep.subr.mxu0 0.0
    %777 = vmatpush1.msra.mxu0 0.0
    %778 = vmatprep.subr.mxu0 0.0
    %779 = vmatpush1.msra.mxu0 0.0
    %780 = vmatprep.subr.mxu0 0.0
    %781 = vmatpush1.msra.mxu0 0.0
    %782 = vmatprep.subr.mxu0 0.0
    %783 = vmatpush1.msra.mxu0 0.0
    %784 = vmatprep.subr.mxu0 0.0
    %785 = vmatpush1.msra.mxu0 0.0
    %786 = vmatprep.subr.mxu0 0.0
    %787 = vmatpush1.msra.mxu0 0.0
    %788 = vmatprep.subr.mxu0 0.0
    %789 = vmatpush1.msra.mxu0 0.0
    %790 = vmatprep.subr.mxu0 0.0
    %791 = vmatpush1.msra.mxu0 0.0
    %792 = vmatprep.subr.mxu0 0.0
    %793 = vmatpush1.msra.mxu0 0.0
    %794 = vmatprep.subr.mxu0 0.0
    %795 = vmatpush1.msra.mxu0 0.0
    %796 = vmatprep.subr.mxu0 0.0
    %797 = vmatpush1.msra.mxu0 0.0
    %798 = vmatprep.subr.mxu0 0.0
    %799 = vmatpush1.msra.mxu0 0.0
    %800 = vmatprep.subr.mxu0 0.0
    %801 = vmatpush1.msra.mxu0 0.0
    %802 = vmatprep.subr.mxu0 0.0
    %803 = vmatpush1.msra.mxu0 0.0
    %804 = vmatprep.subr.mxu0 0.0
    %805 = vmatpush1.msra.mxu0 0.0
    %806 = vmatprep.subr.mxu0 0.0
    %807 = vmatpush1.msra.mxu0 0.0
    %808 = vmatprep.subr.mxu0 0.0
    %809 = vmatpush1.msra.mxu0 0.0
    %810 = vmatprep.subr.mxu0 0.0
    %811 = vmatpush1.msra.mxu0 0.0
    %812 = vmatprep.subr.mxu0 0.0
    %813 = vmatpush1.msra.mxu0 0.0
    %814 = vmatprep.subr.mxu0 0.0
    %815 = vmatpush1.msra.mxu0 0.0
    %816 = vmatprep.subr.mxu0 0.0
    %817 = vmatpush1.msra.mxu0 0.0
    %818 = vmatprep.subr.mxu0 0.0
    %819 = vmatpush1.msra.mxu0 0.0
    %820 = vmatprep.subr.mxu0 0.0
    %821 = vmatpush1.msra.mxu0 0.0
    %822 = vmatprep.mubr.f32.mxu0 0.0
    %823 = vmatmul.mubr.f32.gmra.mrb[0].mxu0 %v756
    %v824 = vpop.f32.mrb[0].mxu0
    %v825 = vadd.f32 0.0, %v824
    %v826 = vpop.f32.mrb[0].mxu0
    %827 = vdwg.mxu0
    %v828 = vld [vmem:[#allocation12 + $0x1] sm:$0x1]
    %v829 = vlaneseq
    %v830 = vshrl.u32 %v829, 7
    %v831 = vsub.s32 0, %v830
    %v832 = vrot.slane %v828, %v831
    %vm833 = vcmask 48128
    %v835 = vsel %vm833, %v752, 0
    %vm837 = vcmask 1045504
    %v839 = vsel %vm837, %v825, 0
    %841 = vmatprep.subr.mxu0 0.0
    %842 = vmatpush1.msra.mxu0 %v839
    %843 = vmatprep.subr.mxu0 0.0
    %844 = vmatpush1.msra.mxu0 0.0
    %845 = vmatprep.subr.mxu0 0.0
    %846 = vmatpush1.msra.mxu0 0.0
    %847 = vmatprep.subr.mxu0 0.0
    %848 = vmatpush1.msra.mxu0 0.0
    %849 = vmatprep.subr.mxu0 0.0
    %850 = vmatpush1.msra.mxu0 0.0
    %851 = vmatprep.subr.mxu0 0.0
    %852 = vmatpush1.msra.mxu0 0.0
    %853 = vmatprep.subr.mxu0 0.0
    %854 = vmatpush1.msra.mxu0 0.0
    %855 = vmatprep.subr.mxu0 0.0
    %856 = vmatpush1.msra.mxu0 0.0
    %857 = vmatprep.subr.mxu0 0.0
    %858 = vmatpush1.msra.mxu0 0.0
    %859 = vmatprep.subr.mxu0 0.0
    %860 = vmatpush1.msra.mxu0 0.0
    %861 = vmatprep.subr.mxu0 0.0
    %862 = vmatpush1.msra.mxu0 0.0
    %863 = vmatprep.subr.mxu0 0.0
    %864 = vmatpush1.msra.mxu0 0.0
    %865 = vmatprep.subr.mxu0 0.0
    %866 = vmatpush1.msra.mxu0 0.0
    %867 = vmatprep.subr.mxu0 0.0
    %868 = vmatpush1.msra.mxu0 0.0
    %869 = vmatprep.subr.mxu0 0.0
    %870 = vmatpush1.msra.mxu0 0.0
    %871 = vmatprep.subr.mxu0 0.0
    %872 = vmatpush1.msra.mxu0 0.0
    %873 = vmatprep.subr.mxu0 0.0
    %874 = vmatpush1.msra.mxu0 0.0
    %875 = vmatprep.subr.mxu0 0.0
    %876 = vmatpush1.msra.mxu0 0.0
    %877 = vmatprep.subr.mxu0 0.0
    %878 = vmatpush1.msra.mxu0 0.0
    %879 = vmatprep.subr.mxu0 0.0
    %880 = vmatpush1.msra.mxu0 0.0
    %881 = vmatprep.subr.mxu0 0.0
    %882 = vmatpush1.msra.mxu0 0.0
    %883 = vmatprep.subr.mxu0 0.0
    %884 = vmatpush1.msra.mxu0 0.0
    %885 = vmatprep.subr.mxu0 0.0
    %886 = vmatpush1.msra.mxu0 0.0
    %887 = vmatprep.subr.mxu0 0.0
    %888 = vmatpush1.msra.mxu0 0.0
    %889 = vmatprep.subr.mxu0 0.0
    %890 = vmatpush1.msra.mxu0 0.0
    %891 = vmatprep.subr.mxu0 0.0
    %892 = vmatpush1.msra.mxu0 0.0
    %893 = vmatprep.subr.mxu0 0.0
    %894 = vmatpush1.msra.mxu0 0.0
    %895 = vmatprep.subr.mxu0 0.0
    %896 = vmatpush1.msra.mxu0 0.0
    %897 = vmatprep.subr.mxu0 0.0
    %898 = vmatpush1.msra.mxu0 0.0
    %899 = vmatprep.subr.mxu0 0.0
    %900 = vmatpush1.msra.mxu0 0.0
    %901 = vmatprep.subr.mxu0 0.0
    %902 = vmatpush1.msra.mxu0 0.0
    %903 = vmatprep.subr.mxu0 0.0
    %904 = vmatpush1.msra.mxu0 0.0
    %905 = vmatprep.mubr.f32.mxu0 0.0
    %906 = vmatmul.mubr.f32.gmra.mrb[0].mxu0 %v835
    %v907 = vpop.f32.mrb[0].mxu0
    %v908 = vadd.f32 %v832, %v907
    %v909 = vpop.f32.mrb[0].mxu0
    %910 = vdwg.mxu0
    %v911 = vld [vmem:[%s3] sm:$0x3f]
    %v912 = vld [vmem:[%s11] sm:$0xff]
    %v913 = vld [vmem:[%s11 + $0x8] sm:$0xff]
    %v914 = vld [vmem:[%s11 + $0x10] sm:$0xff]
    %v915 = vld [vmem:[%s11 + $0x18] sm:$0xff]
    %v916 = vld [vmem:[%s11 + $0x20] sm:$0xff]
    %v917 = vld [vmem:[%s11 + $0x28] sm:$0xff]
    %v918 = vld [vmem:[%s11 + $0x30] sm:$0xff]
    %v919 = vld [vmem:[%s11 + $0x38] sm:$0xff]
    %v920 = vld [vmem:[%s11 + $0x40] sm:$0xff]
    %v921 = vld [vmem:[%s11 + $0x48] sm:$0xff]
    %v922 = vld [vmem:[%s11 + $0x50] sm:$0xff]
    %v923 = vld [vmem:[%s11 + $0x58] sm:$0xff]
    %v924 = vld [vmem:[%s11 + $0x60] sm:$0xff]
    %v925 = vld [vmem:[%s11 + $0x68] sm:$0xff]
    %v926 = vld [vmem:[%s11 + $0x70] sm:$0xff]
    %v927 = vld [vmem:[%s11 + $0x78] sm:$0xff]
    %s928 = scalar_lea.vmem [#allocation10], 2
    %v929 = vld [vmem:[%s928] ss:$4 sm:$0xf]
    %v931 = vlaneseq
    %v932 = vshrl.u32 %v931, 7
    %v933 = vsub.s32 0, %v932
    %v934 = vrot.slane %v929, %v933
    %v935 = vlaneseq
    %v936 = vshrl.u32 %v935, 7
    %v937 = vsub.s32 1, %v936
    %v938 = vrot.slane %v929, %v937
    %v939 = vlaneseq
    %v940 = vshrl.u32 %v939, 7
    %v941 = vsub.s32 2, %v940
    %v942 = vrot.slane %v929, %v941
    %v943 = vlaneseq
    %v944 = vshrl.u32 %v943, 7
    %v945 = vsub.s32 3, %v944
    %v946 = vrot.slane %v929, %v945
    %v952 = vsel %vm671, %v911, 0
    %954 = vmatprep.subr.mxu0 %v913
    %955 = vmatpush1.msra.mxu0 %v912
    %956 = vmatprep.subr.mxu0 %v917
    %957 = vmatpush1.msra.mxu0 %v916
    %958 = vmatprep.subr.mxu0 %v921
    %959 = vmatpush1.msra.mxu0 %v920
    %960 = vmatprep.subr.mxu0 %v925
    %961 = vmatpush1.msra.mxu0 %v924
    %962 = vmatprep.subr.mxu0 0.0
    %963 = vmatpush1.msra.mxu0 0.0
    %964 = vmatprep.subr.mxu0 0.0
    %965 = vmatpush1.msra.mxu0 0.0
    %966 = vmatprep.subr.mxu0 0.0
    %967 = vmatpush1.msra.mxu0 0.0
    %968 = vmatprep.subr.mxu0 0.0
    %969 = vmatpush1.msra.mxu0 0.0
    %970 = vmatprep.subr.mxu0 0.0
    %971 = vmatpush1.msra.mxu0 0.0
    %972 = vmatprep.subr.mxu0 0.0
    %973 = vmatpush1.msra.mxu0 0.0
    %974 = vmatprep.subr.mxu0 0.0
    %975 = vmatpush1.msra.mxu0 0.0
    %976 = vmatprep.subr.mxu0 0.0
    %977 = vmatpush1.msra.mxu0 0.0
    %978 = vmatprep.subr.mxu0 0.0
    %979 = vmatpush1.msra.mxu0 0.0
    %980 = vmatprep.subr.mxu0 0.0
    %981 = vmatpush1.msra.mxu0 0.0
    %982 = vmatprep.subr.mxu0 0.0
    %983 = vmatpush1.msra.mxu0 0.0
    %984 = vmatprep.subr.mxu0 0.0
    %985 = vmatpush1.msra.mxu0 0.0
    %986 = vmatprep.subr.mxu0 0.0
    %987 = vmatpush1.msra.mxu0 0.0
    %988 = vmatprep.subr.mxu0 0.0
    %989 = vmatpush1.msra.mxu0 0.0
    %990 = vmatprep.subr.mxu0 0.0
    %991 = vmatpush1.msra.mxu0 0.0
    %992 = vmatprep.subr.mxu0 0.0
    %993 = vmatpush1.msra.mxu0 0.0
    %994 = vmatprep.subr.mxu0 0.0
    %995 = vmatpush1.msra.mxu0 0.0
    %996 = vmatprep.subr.mxu0 0.0
    %997 = vmatpush1.msra.mxu0 0.0
    %998 = vmatprep.subr.mxu0 0.0
    %999 = vmatpush1.msra.mxu0 0.0
    %1000 = vmatprep.subr.mxu0 0.0
    %1001 = vmatpush1.msra.mxu0 0.0
    %1002 = vmatprep.subr.mxu0 0.0
    %1003 = vmatpush1.msra.mxu0 0.0
    %1004 = vmatprep.subr.mxu0 0.0
    %1005 = vmatpush1.msra.mxu0 0.0
    %1006 = vmatprep.subr.mxu0 0.0
    %1007 = vmatpush1.msra.mxu0 0.0
    %1008 = vmatprep.subr.mxu0 0.0
    %1009 = vmatpush1.msra.mxu0 0.0
    %1010 = vmatprep.subr.mxu0 0.0
    %1011 = vmatpush1.msra.mxu0 0.0
    %1012 = vmatprep.subr.mxu0 0.0
    %1013 = vmatpush1.msra.mxu0 0.0
    %1014 = vmatprep.subr.mxu0 0.0
    %1015 = vmatpush1.msra.mxu0 0.0
    %1016 = vmatprep.subr.mxu0 0.0
    %1017 = vmatpush1.msra.mxu0 0.0
    %1018 = vmatprep.mubr.f32.mxu0 0.0
    %1019 = vmatmul.mubr.f32.gmra.mrb[0].mxu0 %v952
    %v1020 = vpop.f32.mrb[0].mxu0
    %v1021 = vadd.f32 %v934, %v1020
    %v1022 = vpop.f32.mrb[0].mxu0
    %v1023 = vadd.f32 %v938, %v1022
    %1024 = vdwg.mxu0
    %1025 = vmatprep.subr.mxu0 %v915
    %1026 = vmatpush1.msra.mxu0 %v914
    %1027 = vmatprep.subr.mxu0 %v919
    %1028 = vmatpush1.msra.mxu0 %v918
    %1029 = vmatprep.subr.mxu0 %v923
    %1030 = vmatpush1.msra.mxu0 %v922
    %1031 = vmatprep.subr.mxu0 %v927
    %1032 = vmatpush1.msra.mxu0 %v926
    %1033 = vmatprep.subr.mxu0 0.0
    %1034 = vmatpush1.msra.mxu0 0.0
    %1035 = vmatprep.subr.mxu0 0.0
    %1036 = vmatpush1.msra.mxu0 0.0
    %1037 = vmatprep.subr.mxu0 0.0
    %1038 = vmatpush1.msra.mxu0 0.0
    %1039 = vmatprep.subr.mxu0 0.0
    %1040 = vmatpush1.msra.mxu0 0.0
    %1041 = vmatprep.subr.mxu0 0.0
    %1042 = vmatpush1.msra.mxu0 0.0
    %1043 = vmatprep.subr.mxu0 0.0
    %1044 = vmatpush1.msra.mxu0 0.0
    %1045 = vmatprep.subr.mxu0 0.0
    %1046 = vmatpush1.msra.mxu0 0.0
    %1047 = vmatprep.subr.mxu0 0.0
    %1048 = vmatpush1.msra.mxu0 0.0
    %1049 = vmatprep.subr.mxu0 0.0
    %1050 = vmatpush1.msra.mxu0 0.0
    %1051 = vmatprep.subr.mxu0 0.0
    %1052 = vmatpush1.msra.mxu0 0.0
    %1053 = vmatprep.subr.mxu0 0.0
    %1054 = vmatpush1.msra.mxu0 0.0
    %1055 = vmatprep.subr.mxu0 0.0
    %1056 = vmatpush1.msra.mxu0 0.0
    %1057 = vmatprep.subr.mxu0 0.0
    %1058 = vmatpush1.msra.mxu0 0.0
    %1059 = vmatprep.subr.mxu0 0.0
    %1060 = vmatpush1.msra.mxu0 0.0
    %1061 = vmatprep.subr.mxu0 0.0
    %1062 = vmatpush1.msra.mxu0 0.0
    %1063 = vmatprep.subr.mxu0 0.0
    %1064 = vmatpush1.msra.mxu0 0.0
    %1065 = vmatprep.subr.mxu0 0.0
    %1066 = vmatpush1.msra.mxu0 0.0
    %1067 = vmatprep.subr.mxu0 0.0
    %1068 = vmatpush1.msra.mxu0 0.0
    %1069 = vmatprep.subr.mxu0 0.0
    %1070 = vmatpush1.msra.mxu0 0.0
    %1071 = vmatprep.subr.mxu0 0.0
    %1072 = vmatpush1.msra.mxu0 0.0
    %1073 = vmatprep.subr.mxu0 0.0
    %1074 = vmatpush1.msra.mxu0 0.0
    %1075 = vmatprep.subr.mxu0 0.0
    %1076 = vmatpush1.msra.mxu0 0.0
    %1077 = vmatprep.subr.mxu0 0.0
    %1078 = vmatpush1.msra.mxu0 0.0
    %1079 = vmatprep.subr.mxu0 0.0
    %1080 = vmatpush1.msra.mxu0 0.0
    %1081 = vmatprep.subr.mxu0 0.0
    %1082 = vmatpush1.msra.mxu0 0.0
    %1083 = vmatprep.subr.mxu0 0.0
    %1084 = vmatpush1.msra.mxu0 0.0
    %1085 = vmatprep.subr.mxu0 0.0
    %1086 = vmatpush1.msra.mxu0 0.0
    %1087 = vmatprep.subr.mxu0 0.0
    %1088 = vmatpush1.msra.mxu0 0.0
    %1089 = vmatprep.mubr.f32.mxu0 0.0
    %1090 = vmatmul.mubr.f32.gmra.mrb[0].mxu0 %v952
    %v1091 = vpop.f32.mrb[0].mxu0
    %v1092 = vadd.f32 %v942, %v1091
    %v1093 = vpop.f32.mrb[0].mxu0
    %v1094 = vadd.f32 %v946, %v1093
    %1095 = vdwg.mxu0
    %v1096 = vmax.f32 %v1021, 0.0
    %v1097 = vmax.f32 %v1023, 0.0
    %v1098 = vld [vmem:[%s12] sm:$0xff]
    %v1099 = vld [vmem:[%s12 + $0x8] sm:$0xff]
    %v1100 = vld [vmem:[%s12 + $0x10] sm:$0xff]
    %v1101 = vld [vmem:[%s12 + $0x18] sm:$0xff]
    %v1102 = vld [vmem:[%s12 + $0x20] sm:$0xff]
    %v1103 = vld [vmem:[%s12 + $0x28] sm:$0xff]
    %v1104 = vld [vmem:[%s12 + $0x30] sm:$0xff]
    %v1105 = vld [vmem:[%s12 + $0x38] sm:$0xff]
    %v1106 = vld [vmem:[%s12 + $0x40] sm:$0xff]
    %v1107 = vld [vmem:[%s12 + $0x48] sm:$0xff]
    %v1108 = vld [vmem:[%s12 + $0x50] sm:$0xff]
    %v1109 = vld [vmem:[%s12 + $0x58] sm:$0xff]
    %v1110 = vld [vmem:[%s12 + $0x60] sm:$0xff]
    %v1111 = vld [vmem:[%s12 + $0x68] sm:$0xff]
    %v1112 = vld [vmem:[%s12 + $0x70] sm:$0xff]
    %v1113 = vld [vmem:[%s12 + $0x78] sm:$0xff]
    %v1114 = vld [vmem:[%s12 + $0x80] sm:$0xff]
    %v1115 = vld [vmem:[%s12 + $0x88] sm:$0xff]
    %v1116 = vld [vmem:[%s12 + $0x90] sm:$0xff]
    %v1117 = vld [vmem:[%s12 + $0x98] sm:$0xff]
    %v1118 = vld [vmem:[%s12 + $0xa0] sm:$0xff]
    %v1119 = vld [vmem:[%s12 + $0xa8] sm:$0xff]
    %v1120 = vld [vmem:[%s12 + $0xb0] sm:$0xff]
    %v1121 = vld [vmem:[%s12 + $0xb8] sm:$0xff]
    %v1122 = vld [vmem:[%s12 + $0xc0] sm:$0xff]
    %v1123 = vld [vmem:[%s12 + $0xc8] sm:$0xff]
    %v1124 = vld [vmem:[%s12 + $0xd0] sm:$0xff]
    %v1125 = vld [vmem:[%s12 + $0xd8] sm:$0xff]
    %v1126 = vld [vmem:[%s12 + $0xe0] sm:$0xff]
    %v1127 = vld [vmem:[%s12 + $0xe8] sm:$0xff]
    %v1128 = vld [vmem:[%s12 + $0xf0] sm:$0xff]
    %v1129 = vld [vmem:[%s12 + $0xf8] sm:$0xff]
    %v1130 = vld [vmem:[%s12 + $0x100] sm:$0xff]
    %v1131 = vld [vmem:[%s12 + $0x108] sm:$0xff]
    %v1132 = vld [vmem:[%s12 + $0x110] sm:$0xff]
    %v1133 = vld [vmem:[%s12 + $0x118] sm:$0xff]
    %v1134 = vld [vmem:[%s12 + $0x120] sm:$0xff]
    %v1135 = vld [vmem:[%s12 + $0x128] sm:$0xff]
    %v1136 = vld [vmem:[%s12 + $0x130] sm:$0xff]
    %v1137 = vld [vmem:[%s12 + $0x138] sm:$0xff]
    %v1138 = vld [vmem:[%s12 + $0x140] sm:$0xff]
    %v1139 = vld [vmem:[%s12 + $0x148] sm:$0xff]
    %v1140 = vld [vmem:[%s12 + $0x150] sm:$0xff]
    %v1141 = vld [vmem:[%s12 + $0x158] sm:$0xff]
    %v1142 = vld [vmem:[%s12 + $0x160] sm:$0xff]
    %v1143 = vld [vmem:[%s12 + $0x168] sm:$0xff]
    %v1144 = vld [vmem:[%s12 + $0x170] sm:$0xff]
    %v1145 = vld [vmem:[%s12 + $0x178] sm:$0xff]
    %v1146 = vld [vmem:[%s12 + $0x180] sm:$0xff]
    %v1147 = vld [vmem:[%s12 + $0x188] sm:$0xff]
    %v1148 = vld [vmem:[%s12 + $0x190] sm:$0xff]
    %v1149 = vld [vmem:[%s12 + $0x198] sm:$0xff]
    %v1150 = vld [vmem:[%s12 + $0x1a0] sm:$0xff]
    %v1151 = vld [vmem:[%s12 + $0x1a8] sm:$0xff]
    %v1152 = vld [vmem:[%s12 + $0x1b0] sm:$0xff]
    %v1153 = vld [vmem:[%s12 + $0x1b8] sm:$0xff]
    %v1154 = vld [vmem:[%s12 + $0x1c0] sm:$0xff]
    %v1155 = vld [vmem:[%s12 + $0x1c8] sm:$0xff]
    %v1156 = vld [vmem:[%s12 + $0x1d0] sm:$0xff]
    %v1157 = vld [vmem:[%s12 + $0x1d8] sm:$0xff]
    %v1158 = vld [vmem:[%s12 + $0x1e0] sm:$0xff]
    %v1159 = vld [vmem:[%s12 + $0x1e8] sm:$0xff]
    %v1160 = vld [vmem:[%s12 + $0x1f0] sm:$0xff]
    %v1161 = vld [vmem:[%s12 + $0x1f8] sm:$0xff]
    %s1162 = scalar_lea.vmem [#allocation10], 3
    %v1163 = vld [vmem:[%s1162] ss:$4 sm:$0x3]
    %v1165 = vlaneseq
    %v1166 = vshrl.u32 %v1165, 7
    %v1167 = vsub.s32 0, %v1166
    %v1168 = vrot.slane %v1163, %v1167
    %v1169 = vlaneseq
    %v1170 = vshrl.u32 %v1169, 7
    %v1171 = vsub.s32 1, %v1170
    %v1172 = vrot.slane %v1163, %v1171
    %1175 = vmatprep.subr.mxu0 %v1099
    %1176 = vmatpush1.msra.mxu0 %v1098
    %1177 = vmatprep.subr.mxu0 %v1101
    %1178 = vmatpush1.msra.mxu0 %v1100
    %1179 = vmatprep.subr.mxu0 %v1103
    %1180 = vmatpush1.msra.mxu0 %v1102
    %1181 = vmatprep.subr.mxu0 %v1105
    %1182 = vmatpush1.msra.mxu0 %v1104
    %1183 = vmatprep.subr.mxu0 %v1107
    %1184 = vmatpush1.msra.mxu0 %v1106
    %1185 = vmatprep.subr.mxu0 %v1109
    %1186 = vmatpush1.msra.mxu0 %v1108
    %1187 = vmatprep.subr.mxu0 %v1111
    %1188 = vmatpush1.msra.mxu0 %v1110
    %1189 = vmatprep.subr.mxu0 %v1113
    %1190 = vmatpush1.msra.mxu0 %v1112
    %1191 = vmatprep.subr.mxu0 %v1115
    %1192 = vmatpush1.msra.mxu0 %v1114
    %1193 = vmatprep.subr.mxu0 %v1117
    %1194 = vmatpush1.msra.mxu0 %v1116
    %1195 = vmatprep.subr.mxu0 %v1119
    %1196 = vmatpush1.msra.mxu0 %v1118
    %1197 = vmatprep.subr.mxu0 %v1121
    %1198 = vmatpush1.msra.mxu0 %v1120
    %1199 = vmatprep.subr.mxu0 %v1123
    %1200 = vmatpush1.msra.mxu0 %v1122
    %1201 = vmatprep.subr.mxu0 %v1125
    %1202 = vmatpush1.msra.mxu0 %v1124
    %1203 = vmatprep.subr.mxu0 %v1127
    %1204 = vmatpush1.msra.mxu0 %v1126
    %1205 = vmatprep.subr.mxu0 %v1129
    %1206 = vmatpush1.msra.mxu0 %v1128
    %1207 = vmatprep.subr.mxu0 %v1131
    %1208 = vmatpush1.msra.mxu0 %v1130
    %1209 = vmatprep.subr.mxu0 %v1133
    %1210 = vmatpush1.msra.mxu0 %v1132
    %1211 = vmatprep.subr.mxu0 %v1135
    %1212 = vmatpush1.msra.mxu0 %v1134
    %1213 = vmatprep.subr.mxu0 %v1137
    %1214 = vmatpush1.msra.mxu0 %v1136
    %1215 = vmatprep.subr.mxu0 %v1139
    %1216 = vmatpush1.msra.mxu0 %v1138
    %1217 = vmatprep.subr.mxu0 %v1141
    %1218 = vmatpush1.msra.mxu0 %v1140
    %1219 = vmatprep.subr.mxu0 %v1143
    %1220 = vmatpush1.msra.mxu0 %v1142
    %1221 = vmatprep.subr.mxu0 %v1145
    %1222 = vmatpush1.msra.mxu0 %v1144
    %1223 = vmatprep.subr.mxu0 %v1147
    %1224 = vmatpush1.msra.mxu0 %v1146
    %1225 = vmatprep.subr.mxu0 %v1149
    %1226 = vmatpush1.msra.mxu0 %v1148
    %1227 = vmatprep.subr.mxu0 %v1151
    %1228 = vmatpush1.msra.mxu0 %v1150
    %1229 = vmatprep.subr.mxu0 %v1153
    %1230 = vmatpush1.msra.mxu0 %v1152
    %1231 = vmatprep.subr.mxu0 %v1155
    %1232 = vmatpush1.msra.mxu0 %v1154
    %1233 = vmatprep.subr.mxu0 %v1157
    %1234 = vmatpush1.msra.mxu0 %v1156
    %1235 = vmatprep.subr.mxu0 %v1159
    %1236 = vmatpush1.msra.mxu0 %v1158
    %1237 = vmatprep.subr.mxu0 %v1161
    %1238 = vmatpush1.msra.mxu0 %v1160
    %1239 = vmatprep.mubr.f32.mxu0 %v1097
    %1240 = vmatmul.mubr.f32.gmra.mrb[0].mxu0 %v1096
    %v1241 = vpop.f32.mrb[0].mxu0
    %v1242 = vadd.f32 %v1168, %v1241
    %v1243 = vpop.f32.mrb[0].mxu0
    %v1244 = vadd.f32 %v1172, %v1243
    %1245 = vdwg.mxu0
    %v1246 = vmax.f32 %v1242, 0.0
    %v1247 = vmax.f32 %v1244, 0.0
    %v1248 = vadd.f32 %v1246, %v1092
    %v1249 = vadd.f32 %v1247, %v1094
    %v1250 = vmax.f32 %v1248, 0.0
    %v1251 = vmax.f32 %v1249, 0.0
    %v1252 = vld [vmem:[%s13] sm:$0xff]
    %v1253 = vld [vmem:[%s13 + $0x8] sm:$0xff]
    %v1254 = vld [vmem:[%s13 + $0x10] sm:$0xff]
    %v1255 = vld [vmem:[%s13 + $0x18] sm:$0xff]
    %v1256 = vld [vmem:[%s13 + $0x20] sm:$0xff]
    %v1257 = vld [vmem:[%s13 + $0x28] sm:$0xff]
    %v1258 = vld [vmem:[%s13 + $0x30] sm:$0xff]
    %v1259 = vld [vmem:[%s13 + $0x38] sm:$0xff]
    %v1260 = vld [vmem:[%s13 + $0x40] sm:$0xff]
    %v1261 = vld [vmem:[%s13 + $0x48] sm:$0xff]
    %v1262 = vld [vmem:[%s13 + $0x50] sm:$0xff]
    %v1263 = vld [vmem:[%s13 + $0x58] sm:$0xff]
    %v1264 = vld [vmem:[%s13 + $0x60] sm:$0xff]
    %v1265 = vld [vmem:[%s13 + $0x68] sm:$0xff]
    %v1266 = vld [vmem:[%s13 + $0x70] sm:$0xff]
    %v1267 = vld [vmem:[%s13 + $0x78] sm:$0xff]
    %v1268 = vld [vmem:[%s13 + $0x80] sm:$0xff]
    %v1269 = vld [vmem:[%s13 + $0x88] sm:$0xff]
    %v1270 = vld [vmem:[%s13 + $0x90] sm:$0xff]
    %v1271 = vld [vmem:[%s13 + $0x98] sm:$0xff]
    %v1272 = vld [vmem:[%s13 + $0xa0] sm:$0xff]
    %v1273 = vld [vmem:[%s13 + $0xa8] sm:$0xff]
    %v1274 = vld [vmem:[%s13 + $0xb0] sm:$0xff]
    %v1275 = vld [vmem:[%s13 + $0xb8] sm:$0xff]
    %v1276 = vld [vmem:[%s13 + $0xc0] sm:$0xff]
    %v1277 = vld [vmem:[%s13 + $0xc8] sm:$0xff]
    %v1278 = vld [vmem:[%s13 + $0xd0] sm:$0xff]
    %v1279 = vld [vmem:[%s13 + $0xd8] sm:$0xff]
    %v1280 = vld [vmem:[%s13 + $0xe0] sm:$0xff]
    %v1281 = vld [vmem:[%s13 + $0xe8] sm:$0xff]
    %v1282 = vld [vmem:[%s13 + $0xf0] sm:$0xff]
    %v1283 = vld [vmem:[%s13 + $0xf8] sm:$0xff]
    %v1284 = vld [vmem:[%s13 + $0x100] sm:$0xff]
    %v1285 = vld [vmem:[%s13 + $0x108] sm:$0xff]
    %v1286 = vld [vmem:[%s13 + $0x110] sm:$0xff]
    %v1287 = vld [vmem:[%s13 + $0x118] sm:$0xff]
    %1288 = vmatprep.subr.mxu0 0.0
    %1289 = vmatpush1.msra.mxu0 %v1256
    %1290 = vmatprep.subr.mxu0 0.0
    %1291 = vmatpush1.msra.mxu0 %v1257
    %1292 = vmatprep.subr.mxu0 0.0
    %1293 = vmatpush1.msra.mxu0 %v1258
    %1294 = vmatprep.subr.mxu0 0.0
    %1295 = vmatpush1.msra.mxu0 %v1259
    %1296 = vmatprep.subr.mxu0 0.0
    %1297 = vmatpush1.msra.mxu0 %v1260
    %1298 = vmatprep.subr.mxu0 0.0
    %1299 = vmatpush1.msra.mxu0 %v1261
    %1300 = vmatprep.subr.mxu0 0.0
    %1301 = vmatpush1.msra.mxu0 %v1262
    %1302 = vmatprep.subr.mxu0 0.0
    %1303 = vmatpush1.msra.mxu0 %v1263
    %1304 = vmatprep.subr.mxu0 0.0
    %1305 = vmatpush1.msra.mxu0 %v1264
    %1306 = vmatprep.subr.mxu0 0.0
    %1307 = vmatpush1.msra.mxu0 %v1265
    %1308 = vmatprep.subr.mxu0 0.0
    %1309 = vmatpush1.msra.mxu0 %v1266
    %1310 = vmatprep.subr.mxu0 0.0
    %1311 = vmatpush1.msra.mxu0 %v1267
    %1312 = vmatprep.subr.mxu0 0.0
    %1313 = vmatpush1.msra.mxu0 %v1268
    %1314 = vmatprep.subr.mxu0 0.0
    %1315 = vmatpush1.msra.mxu0 %v1269
    %1316 = vmatprep.subr.mxu0 0.0
    %1317 = vmatpush1.msra.mxu0 %v1270
    %1318 = vmatprep.subr.mxu0 0.0
    %1319 = vmatpush1.msra.mxu0 %v1271
    %1320 = vmatprep.subr.mxu0 0.0
    %1321 = vmatpush1.msra.mxu0 %v1272
    %1322 = vmatprep.subr.mxu0 0.0
    %1323 = vmatpush1.msra.mxu0 %v1273
    %1324 = vmatprep.subr.mxu0 0.0
    %1325 = vmatpush1.msra.mxu0 %v1274
    %1326 = vmatprep.subr.mxu0 0.0
    %1327 = vmatpush1.msra.mxu0 %v1275
    %1328 = vmatprep.subr.mxu0 0.0
    %1329 = vmatpush1.msra.mxu0 %v1276
    %1330 = vmatprep.subr.mxu0 0.0
    %1331 = vmatpush1.msra.mxu0 %v1277
    %1332 = vmatprep.subr.mxu0 0.0
    %1333 = vmatpush1.msra.mxu0 %v1278
    %1334 = vmatprep.subr.mxu0 0.0
    %1335 = vmatpush1.msra.mxu0 %v1279
    %1336 = vmatprep.subr.mxu0 0.0
    %1337 = vmatpush1.msra.mxu0 %v1280
    %1338 = vmatprep.subr.mxu0 0.0
    %1339 = vmatpush1.msra.mxu0 %v1281
    %1340 = vmatprep.subr.mxu0 0.0
    %1341 = vmatpush1.msra.mxu0 %v1282
    %1342 = vmatprep.subr.mxu0 0.0
    %1343 = vmatpush1.msra.mxu0 %v1283
    %1344 = vmatprep.subr.mxu0 0.0
    %1345 = vmatpush1.msra.mxu0 %v1284
    %1346 = vmatprep.subr.mxu0 0.0
    %1347 = vmatpush1.msra.mxu0 %v1285
    %1348 = vmatprep.subr.mxu0 0.0
    %1349 = vmatpush1.msra.mxu0 %v1286
    %1350 = vmatprep.subr.mxu0 0.0
    %1351 = vmatpush1.msra.mxu0 %v1287
    %1352 = vmatprep.mubr.f32.mxu0 %v1251
    %1353 = vmatmul.mubr.f32.gmra.mrb[0].mxu0 %v1250
    %v1354 = vpop.f32.mrb[0].mxu0
    %v1355 = vadd.f32 0.0, %v1354
    %v1356 = vpop.f32.mrb[0].mxu0
    %1357 = vdwg.mxu0
    %v1359 = vsel %vm671, %v908, 0
    %1361 = vmatprep.subr.mxu0 0.0
    %1362 = vmatpush1.msra.mxu0 %v1252
    %1363 = vmatprep.subr.mxu0 0.0
    %1364 = vmatpush1.msra.mxu0 %v1253
    %1365 = vmatprep.subr.mxu0 0.0
    %1366 = vmatpush1.msra.mxu0 %v1254
    %1367 = vmatprep.subr.mxu0 0.0
    %1368 = vmatpush1.msra.mxu0 %v1255
    %1369 = vmatprep.subr.mxu0 0.0
    %1370 = vmatpush1.msra.mxu0 0.0
    %1371 = vmatprep.subr.mxu0 0.0
    %1372 = vmatpush1.msra.mxu0 0.0
    %1373 = vmatprep.subr.mxu0 0.0
    %1374 = vmatpush1.msra.mxu0 0.0
    %1375 = vmatprep.subr.mxu0 0.0
    %1376 = vmatpush1.msra.mxu0 0.0
    %1377 = vmatprep.subr.mxu0 0.0
    %1378 = vmatpush1.msra.mxu0 0.0
    %1379 = vmatprep.subr.mxu0 0.0
    %1380 = vmatpush1.msra.mxu0 0.0
    %1381 = vmatprep.subr.mxu0 0.0
    %1382 = vmatpush1.msra.mxu0 0.0
    %1383 = vmatprep.subr.mxu0 0.0
    %1384 = vmatpush1.msra.mxu0 0.0
    %1385 = vmatprep.subr.mxu0 0.0
    %1386 = vmatpush1.msra.mxu0 0.0
    %1387 = vmatprep.subr.mxu0 0.0
    %1388 = vmatpush1.msra.mxu0 0.0
    %1389 = vmatprep.subr.mxu0 0.0
    %1390 = vmatpush1.msra.mxu0 0.0
    %1391 = vmatprep.subr.mxu0 0.0
    %1392 = vmatpush1.msra.mxu0 0.0
    %1393 = vmatprep.subr.mxu0 0.0
    %1394 = vmatpush1.msra.mxu0 0.0
    %1395 = vmatprep.subr.mxu0 0.0
    %1396 = vmatpush1.msra.mxu0 0.0
    %1397 = vmatprep.subr.mxu0 0.0
    %1398 = vmatpush1.msra.mxu0 0.0
    %1399 = vmatprep.subr.mxu0 0.0
    %1400 = vmatpush1.msra.mxu0 0.0
    %1401 = vmatprep.subr.mxu0 0.0
    %1402 = vmatpush1.msra.mxu0 0.0
    %1403 = vmatprep.subr.mxu0 0.0
    %1404 = vmatpush1.msra.mxu0 0.0
    %1405 = vmatprep.subr.mxu0 0.0
    %1406 = vmatpush1.msra.mxu0 0.0
    %1407 = vmatprep.subr.mxu0 0.0
    %1408 = vmatpush1.msra.mxu0 0.0
    %1409 = vmatprep.subr.mxu0 0.0
    %1410 = vmatpush1.msra.mxu0 0.0
    %1411 = vmatprep.subr.mxu0 0.0
    %1412 = vmatpush1.msra.mxu0 0.0
    %1413 = vmatprep.subr.mxu0 0.0
    %1414 = vmatpush1.msra.mxu0 0.0
    %1415 = vmatprep.subr.mxu0 0.0
    %1416 = vmatpush1.msra.mxu0 0.0
    %1417 = vmatprep.subr.mxu0 0.0
    %1418 = vmatpush1.msra.mxu0 0.0
    %1419 = vmatprep.subr.mxu0 0.0
    %1420 = vmatpush1.msra.mxu0 0.0
    %1421 = vmatprep.subr.mxu0 0.0
    %1422 = vmatpush1.msra.mxu0 0.0
    %1423 = vmatprep.subr.mxu0 0.0
    %1424 = vmatpush1.msra.mxu0 0.0
    %1425 = vmatprep.mubr.f32.mxu0 0.0
    %1426 = vmatmul.mubr.f32.gmra.mrb[0].mxu0 %v1359
    %v1427 = vpop.f32.mrb[0].mxu0
    %v1428 = vadd.f32 %v1355, %v1427
    %v1429 = vpop.f32.mrb[0].mxu0
    %1430 = vdwg.mxu0
    %v1431 = vld [vmem:[#allocation12 + $0x3] sm:$0x1]
    %v1432 = vlaneseq
    %v1433 = vshrl.u32 %v1432, 7
    %v1434 = vsub.s32 0, %v1433
    %v1435 = vrot.slane %v1431, %v1434
    %v1436 = vadd.f32 %v1428, %v1435
    %v1437 = vmax.f32 %v1436, 0.0
    %v1438 = vld [vmem:[#allocation9] sm:$0xff]
    %v1439 = vld [vmem:[#allocation9 + $0x8] sm:$0xff]
    %v1440 = vld [vmem:[#allocation9 + $0x10] sm:$0xff]
    %v1441 = vld [vmem:[#allocation9 + $0x18] sm:$0xff]
    %v1442 = vld [vmem:[#allocation12 + $0x4] sm:$0x1]
    %v1443 = vlaneseq
    %v1444 = vshrl.u32 %v1443, 7
    %v1445 = vsub.s32 0, %v1444
    %v1446 = vrot.slane %v1442, %v1445
    %v1448 = vsel %vm671, %v1437, 0
    %1450 = vmatprep.subr.mxu0 0.0
    %1451 = vmatpush1.msra.mxu0 %v1438
    %1452 = vmatprep.subr.mxu0 0.0
    %1453 = vmatpush1.msra.mxu0 %v1439
    %1454 = vmatprep.subr.mxu0 0.0
    %1455 = vmatpush1.msra.mxu0 %v1440
    %1456 = vmatprep.subr.mxu0 0.0
    %1457 = vmatpush1.msra.mxu0 %v1441
    %1458 = vmatprep.subr.mxu0 0.0
    %1459 = vmatpush1.msra.mxu0 0.0
    %1460 = vmatprep.subr.mxu0 0.0
    %1461 = vmatpush1.msra.mxu0 0.0
    %1462 = vmatprep.subr.mxu0 0.0
    %1463 = vmatpush1.msra.mxu0 0.0
    %1464 = vmatprep.subr.mxu0 0.0
    %1465 = vmatpush1.msra.mxu0 0.0
    %1466 = vmatprep.subr.mxu0 0.0
    %1467 = vmatpush1.msra.mxu0 0.0
    %1468 = vmatprep.subr.mxu0 0.0
    %1469 = vmatpush1.msra.mxu0 0.0
    %1470 = vmatprep.subr.mxu0 0.0
    %1471 = vmatpush1.msra.mxu0 0.0
    %1472 = vmatprep.subr.mxu0 0.0
    %1473 = vmatpush1.msra.mxu0 0.0
    %1474 = vmatprep.subr.mxu0 0.0
    %1475 = vmatpush1.msra.mxu0 0.0
    %1476 = vmatprep.subr.mxu0 0.0
    %1477 = vmatpush1.msra.mxu0 0.0
    %1478 = vmatprep.subr.mxu0 0.0
    %1479 = vmatpush1.msra.mxu0 0.0
    %1480 = vmatprep.subr.mxu0 0.0
    %1481 = vmatpush1.msra.mxu0 0.0
    %1482 = vmatprep.subr.mxu0 0.0
    %1483 = vmatpush1.msra.mxu0 0.0
    %1484 = vmatprep.subr.mxu0 0.0
    %1485 = vmatpush1.msra.mxu0 0.0
    %1486 = vmatprep.subr.mxu0 0.0
    %1487 = vmatpush1.msra.mxu0 0.0
    %1488 = vmatprep.subr.mxu0 0.0
    %1489 = vmatpush1.msra.mxu0 0.0
    %1490 = vmatprep.subr.mxu0 0.0
    %1491 = vmatpush1.msra.mxu0 0.0
    %1492 = vmatprep.subr.mxu0 0.0
    %1493 = vmatpush1.msra.mxu0 0.0
    %1494 = vmatprep.subr.mxu0 0.0
    %1495 = vmatpush1.msra.mxu0 0.0
    %1496 = vmatprep.subr.mxu0 0.0
    %1497 = vmatpush1.msra.mxu0 0.0
    %1498 = vmatprep.subr.mxu0 0.0
    %1499 = vmatpush1.msra.mxu0 0.0
    %1500 = vmatprep.subr.mxu0 0.0
    %1501 = vmatpush1.msra.mxu0 0.0
    %1502 = vmatprep.subr.mxu0 0.0
    %1503 = vmatpush1.msra.mxu0 0.0
    %1504 = vmatprep.subr.mxu0 0.0
    %1505 = vmatpush1.msra.mxu0 0.0
    %1506 = vmatprep.subr.mxu0 0.0
    %1507 = vmatpush1.msra.mxu0 0.0
    %1508 = vmatprep.subr.mxu0 0.0
    %1509 = vmatpush1.msra.mxu0 0.0
    %1510 = vmatprep.subr.mxu0 0.0
    %1511 = vmatpush1.msra.mxu0 0.0
    %1512 = vmatprep.subr.mxu0 0.0
    %1513 = vmatpush1.msra.mxu0 0.0
    %1514 = vmatprep.mubr.f32.mxu0 0.0
    %1515 = vmatmul.mubr.f32.gmra.mrb[0].mxu0 %v1448
    %v1516 = vpop.f32.mrb[0].mxu0
    %v1517 = vadd.f32 %v1446, %v1516
    %v1518 = vpop.f32.mrb[0].mxu0
    %1519 = vdwg.mxu0
    %v1520 = vmax.f32 %v1517, 0.0
    %v1521 = vld [vmem:[%s15] sm:$0xff]
    %v1522 = vld [vmem:[%s15 + $0x8] sm:$0xff]
    %v1523 = vld [vmem:[%s15 + $0x10] sm:$0xff]
    %v1524 = vld [vmem:[%s15 + $0x18] sm:$0xff]
    %v1525 = vld [vmem:[#allocation12 + $0x5] sm:$0x1]
    %v1526 = vlaneseq
    %v1527 = vshrl.u32 %v1526, 7
    %v1528 = vsub.s32 0, %v1527
    %v1529 = vrot.slane %v1525, %v1528
    %1534 = vrot.lane.b32.xlu0 %v1521, 120
    %v1535 = vpop.permute.xlu0 %1534
    %1536 = vrot.lane.b32.xlu0 %v1522, 120
    %v1537 = vpop.permute.xlu0 %1536
    %1538 = vrot.lane.b32.xlu0 %v1523, 120
    %v1539 = vpop.permute.xlu0 %1538
    %1540 = vrot.lane.b32.xlu0 %v1524, 120
    %v1541 = vpop.permute.xlu0 %1540
    %v1547 = vsel %vm671, %v1520, 0
    %1549 = vmatprep.subr.mxu0 0.0
    %1550 = vmatpush1.msra.mxu0 %v1535
    %1551 = vmatprep.subr.mxu0 0.0
    %1552 = vmatpush1.msra.mxu0 %v1537
    %1553 = vmatprep.subr.mxu0 0.0
    %1554 = vmatpush1.msra.mxu0 %v1539
    %1555 = vmatprep.subr.mxu0 0.0
    %1556 = vmatpush1.msra.mxu0 %v1541
    %1557 = vmatprep.subr.mxu0 0.0
    %1558 = vmatpush1.msra.mxu0 0.0
    %1559 = vmatprep.subr.mxu0 0.0
    %1560 = vmatpush1.msra.mxu0 0.0
    %1561 = vmatprep.subr.mxu0 0.0
    %1562 = vmatpush1.msra.mxu0 0.0
    %1563 = vmatprep.subr.mxu0 0.0
    %1564 = vmatpush1.msra.mxu0 0.0
    %1565 = vmatprep.subr.mxu0 0.0
    %1566 = vmatpush1.msra.mxu0 0.0
    %1567 = vmatprep.subr.mxu0 0.0
    %1568 = vmatpush1.msra.mxu0 0.0
    %1569 = vmatprep.subr.mxu0 0.0
    %1570 = vmatpush1.msra.mxu0 0.0
    %1571 = vmatprep.subr.mxu0 0.0
    %1572 = vmatpush1.msra.mxu0 0.0
    %1573 = vmatprep.subr.mxu0 0.0
    %1574 = vmatpush1.msra.mxu0 0.0
    %1575 = vmatprep.subr.mxu0 0.0
    %1576 = vmatpush1.msra.mxu0 0.0
    %1577 = vmatprep.subr.mxu0 0.0
    %1578 = vmatpush1.msra.mxu0 0.0
    %1579 = vmatprep.subr.mxu0 0.0
    %1580 = vmatpush1.msra.mxu0 0.0
    %1581 = vmatprep.subr.mxu0 0.0
    %1582 = vmatpush1.msra.mxu0 0.0
    %1583 = vmatprep.subr.mxu0 0.0
    %1584 = vmatpush1.msra.mxu0 0.0
    %1585 = vmatprep.subr.mxu0 0.0
    %1586 = vmatpush1.msra.mxu0 0.0
    %1587 = vmatprep.subr.mxu0 0.0
    %1588 = vmatpush1.msra.mxu0 0.0
    %1589 = vmatprep.subr.mxu0 0.0
    %1590 = vmatpush1.msra.mxu0 0.0
    %1591 = vmatprep.subr.mxu0 0.0
    %1592 = vmatpush1.msra.mxu0 0.0
    %1593 = vmatprep.subr.mxu0 0.0
    %1594 = vmatpush1.msra.mxu0 0.0
    %1595 = vmatprep.subr.mxu0 0.0
    %1596 = vmatpush1.msra.mxu0 0.0
    %1597 = vmatprep.subr.mxu0 0.0
    %1598 = vmatpush1.msra.mxu0 0.0
    %1599 = vmatprep.subr.mxu0 0.0
    %1600 = vmatpush1.msra.mxu0 0.0
    %1601 = vmatprep.subr.mxu0 0.0
    %1602 = vmatpush1.msra.mxu0 0.0
    %1603 = vmatprep.subr.mxu0 0.0
    %1604 = vmatpush1.msra.mxu0 0.0
    %1605 = vmatprep.subr.mxu0 0.0
    %1606 = vmatpush1.msra.mxu0 0.0
    %1607 = vmatprep.subr.mxu0 0.0
    %1608 = vmatpush1.msra.mxu0 0.0
    %1609 = vmatprep.subr.mxu0 0.0
    %1610 = vmatpush1.msra.mxu0 0.0
    %1611 = vmatprep.subr.mxu0 0.0
    %1612 = vmatpush1.msra.mxu0 0.0
    %1613 = vmatprep.mubr.f32.mxu0 0.0
    %1614 = vmatmul.mubr.f32.gmra.mrb[0].mxu0 %v1547
    %v1615 = vpop.f32.mrb[0].mxu0
    %v1616 = vadd.f32 %v1529, %v1615
    %v1617 = vpop.f32.mrb[0].mxu0
    %1618 = vdwg.mxu0
    %vm1619 = vcmask 5120
    %v1620 = vsel %vm1619, %v1616, -inf
    %v1621 = vrot.slane %v1620, 4
    %v1622 = vmax.f32 %v1620, %v1621
    %v1623 = vrot.slane %v1622, 2
    %v1624 = vmax.f32 %v1622, %v1623
    %v1625 = vrot.slane %v1624, 1
    %v1626 = vmax.f32 %v1624, %v1625
    %v1627 = vsub.f32 %v1616, %v1626
    %v1628 = vmul.f32 %v1627, 1.442695
    %v1629 = vpow.pop %v1628
    %v1630 = vld [vmem:[#allocation2] sm:$0x3f]
    %v1632 = vsel %vm833, %v1630, 0
    %v1635 = vsel %vm837, %v1629, 0
    %1637 = vmatprep.subr.mxu0 0.0
    %1638 = vmatpush1.msra.mxu0 %v1635
    %1639 = vmatprep.subr.mxu0 0.0
    %1640 = vmatpush1.msra.mxu0 0.0
    %1641 = vmatprep.subr.mxu0 0.0
    %1642 = vmatpush1.msra.mxu0 0.0
    %1643 = vmatprep.subr.mxu0 0.0
    %1644 = vmatpush1.msra.mxu0 0.0
    %1645 = vmatprep.subr.mxu0 0.0
    %1646 = vmatpush1.msra.mxu0 0.0
    %1647 = vmatprep.subr.mxu0 0.0
    %1648 = vmatpush1.msra.mxu0 0.0
    %1649 = vmatprep.subr.mxu0 0.0
    %1650 = vmatpush1.msra.mxu0 0.0
    %1651 = vmatprep.subr.mxu0 0.0
    %1652 = vmatpush1.msra.mxu0 0.0
    %1653 = vmatprep.subr.mxu0 0.0
    %1654 = vmatpush1.msra.mxu0 0.0
    %1655 = vmatprep.subr.mxu0 0.0
    %1656 = vmatpush1.msra.mxu0 0.0
    %1657 = vmatprep.subr.mxu0 0.0
    %1658 = vmatpush1.msra.mxu0 0.0
    %1659 = vmatprep.subr.mxu0 0.0
    %1660 = vmatpush1.msra.mxu0 0.0
    %1661 = vmatprep.subr.mxu0 0.0
    %1662 = vmatpush1.msra.mxu0 0.0
    %1663 = vmatprep.subr.mxu0 0.0
    %1664 = vmatpush1.msra.mxu0 0.0
    %1665 = vmatprep.subr.mxu0 0.0
    %1666 = vmatpush1.msra.mxu0 0.0
    %1667 = vmatprep.subr.mxu0 0.0
    %1668 = vmatpush1.msra.mxu0 0.0
    %1669 = vmatprep.subr.mxu0 0.0
    %1670 = vmatpush1.msra.mxu0 0.0
    %1671 = vmatprep.subr.mxu0 0.0
    %1672 = vmatpush1.msra.mxu0 0.0
    %1673 = vmatprep.subr.mxu0 0.0
    %1674 = vmatpush1.msra.mxu0 0.0
    %1675 = vmatprep.subr.mxu0 0.0
    %1676 = vmatpush1.msra.mxu0 0.0
    %1677 = vmatprep.subr.mxu0 0.0
    %1678 = vmatpush1.msra.mxu0 0.0
    %1679 = vmatprep.subr.mxu0 0.0
    %1680 = vmatpush1.msra.mxu0 0.0
    %1681 = vmatprep.subr.mxu0 0.0
    %1682 = vmatpush1.msra.mxu0 0.0
    %1683 = vmatprep.subr.mxu0 0.0
    %1684 = vmatpush1.msra.mxu0 0.0
    %1685 = vmatprep.subr.mxu0 0.0
    %1686 = vmatpush1.msra.mxu0 0.0
    %1687 = vmatprep.subr.mxu0 0.0
    %1688 = vmatpush1.msra.mxu0 0.0
    %1689 = vmatprep.subr.mxu0 0.0
    %1690 = vmatpush1.msra.mxu0 0.0
    %1691 = vmatprep.subr.mxu0 0.0
    %1692 = vmatpush1.msra.mxu0 0.0
    %1693 = vmatprep.subr.mxu0 0.0
    %1694 = vmatpush1.msra.mxu0 0.0
    %1695 = vmatprep.subr.mxu0 0.0
    %1696 = vmatpush1.msra.mxu0 0.0
    %1697 = vmatprep.subr.mxu0 0.0
    %1698 = vmatpush1.msra.mxu0 0.0
    %1699 = vmatprep.subr.mxu0 0.0
    %1700 = vmatpush1.msra.mxu0 0.0
    %1701 = vmatprep.mubr.f32.mxu0 0.0
    %1702 = vmatmul.mubr.f32.gmra.mrb[0].mxu0 %v1632
    %v1703 = vpop.f32.mrb[0].mxu0
    %v1704 = vadd.f32 0.0, %v1703
    %v1705 = vpop.f32.mrb[0].mxu0
    %1706 = vdwg.mxu0
    %v1707 = vrcp.pop %v1704
    %v1708 = vmul.f32 %v1629, %v1707
    %v1709 = vld [vmem:[#allocation12 + $0x6] sm:$0x1]
    %v1711 = vsel %vm671, %v751, 0
    %1713 = vmatprep.subr.mxu0 0.0
    %1714 = vmatpush1.msra.mxu0 %v1521
    %1715 = vmatprep.subr.mxu0 0.0
    %1716 = vmatpush1.msra.mxu0 %v1522
    %1717 = vmatprep.subr.mxu0 0.0
    %1718 = vmatpush1.msra.mxu0 %v1523
    %1719 = vmatprep.subr.mxu0 0.0
    %1720 = vmatpush1.msra.mxu0 %v1524
    %1721 = vmatprep.subr.mxu0 0.0
    %1722 = vmatpush1.msra.mxu0 0.0
    %1723 = vmatprep.subr.mxu0 0.0
    %1724 = vmatpush1.msra.mxu0 0.0
    %1725 = vmatprep.subr.mxu0 0.0
    %1726 = vmatpush1.msra.mxu0 0.0
    %1727 = vmatprep.subr.mxu0 0.0
    %1728 = vmatpush1.msra.mxu0 0.0
    %1729 = vmatprep.subr.mxu0 0.0
    %1730 = vmatpush1.msra.mxu0 0.0
    %1731 = vmatprep.subr.mxu0 0.0
    %1732 = vmatpush1.msra.mxu0 0.0
    %1733 = vmatprep.subr.mxu0 0.0
    %1734 = vmatpush1.msra.mxu0 0.0
    %1735 = vmatprep.subr.mxu0 0.0
    %1736 = vmatpush1.msra.mxu0 0.0
    %1737 = vmatprep.subr.mxu0 0.0
    %1738 = vmatpush1.msra.mxu0 0.0
    %1739 = vmatprep.subr.mxu0 0.0
    %1740 = vmatpush1.msra.mxu0 0.0
    %1741 = vmatprep.subr.mxu0 0.0
    %1742 = vmatpush1.msra.mxu0 0.0
    %1743 = vmatprep.subr.mxu0 0.0
    %1744 = vmatpush1.msra.mxu0 0.0
    %1745 = vmatprep.subr.mxu0 0.0
    %1746 = vmatpush1.msra.mxu0 0.0
    %1747 = vmatprep.subr.mxu0 0.0
    %1748 = vmatpush1.msra.mxu0 0.0
    %1749 = vmatprep.subr.mxu0 0.0
    %1750 = vmatpush1.msra.mxu0 0.0
    %1751 = vmatprep.subr.mxu0 0.0
    %1752 = vmatpush1.msra.mxu0 0.0
    %1753 = vmatprep.subr.mxu0 0.0
    %1754 = vmatpush1.msra.mxu0 0.0
    %1755 = vmatprep.subr.mxu0 0.0
    %1756 = vmatpush1.msra.mxu0 0.0
    %1757 = vmatprep.subr.mxu0 0.0
    %1758 = vmatpush1.msra.mxu0 0.0
    %1759 = vmatprep.subr.mxu0 0.0
    %1760 = vmatpush1.msra.mxu0 0.0
    %1761 = vmatprep.subr.mxu0 0.0
    %1762 = vmatpush1.msra.mxu0 0.0
    %1763 = vmatprep.subr.mxu0 0.0
    %1764 = vmatpush1.msra.mxu0 0.0
    %1765 = vmatprep.subr.mxu0 0.0
    %1766 = vmatpush1.msra.mxu0 0.0
    %1767 = vmatprep.subr.mxu0 0.0
    %1768 = vmatpush1.msra.mxu0 0.0
    %1769 = vmatprep.subr.mxu0 0.0
    %1770 = vmatpush1.msra.mxu0 0.0
    %1771 = vmatprep.subr.mxu0 0.0
    %1772 = vmatpush1.msra.mxu0 0.0
    %1773 = vmatprep.subr.mxu0 0.0
    %1774 = vmatpush1.msra.mxu0 0.0
    %1775 = vmatprep.subr.mxu0 0.0
    %1776 = vmatpush1.msra.mxu0 0.0
    %1777 = vmatprep.mubr.f32.mxu0 0.0
    %1778 = vmatmul.mubr.f32.gmra.mrb[0].mxu0 %v1711
    %v1779 = vpop.f32.mrb[0].mxu0
    %v1780 = vadd.f32 0.0, %v1779
    %v1781 = vpop.f32.mrb[0].mxu0
    %1782 = vdwg.mxu0
    %v1783 = vld [vmem:[#allocation4] sm:$0x3f]
    %vm1784 = vcmask 15360
    %v1786 = vsel %vm1784, %v1783, 0
    %vm1788 = vcmask 1041408
    %v1790 = vsel %vm1788, %v1780, 0
    %1792 = vmatprep.subr.mxu0 0.0
    %1793 = vmatpush1.msra.mxu0 %v1790
    %1794 = vmatprep.subr.mxu0 0.0
    %1795 = vmatpush1.msra.mxu0 0.0
    %1796 = vmatprep.subr.mxu0 0.0
    %1797 = vmatpush1.msra.mxu0 0.0
    %1798 = vmatprep.subr.mxu0 0.0
    %1799 = vmatpush1.msra.mxu0 0.0
    %1800 = vmatprep.subr.mxu0 0.0
    %1801 = vmatpush1.msra.mxu0 0.0
    %1802 = vmatprep.subr.mxu0 0.0
    %1803 = vmatpush1.msra.mxu0 0.0
    %1804 = vmatprep.subr.mxu0 0.0
    %1805 = vmatpush1.msra.mxu0 0.0
    %1806 = vmatprep.subr.mxu0 0.0
    %1807 = vmatpush1.msra.mxu0 0.0
    %1808 = vmatprep.subr.mxu0 0.0
    %1809 = vmatpush1.msra.mxu0 0.0
    %1810 = vmatprep.subr.mxu0 0.0
    %1811 = vmatpush1.msra.mxu0 0.0
    %1812 = vmatprep.subr.mxu0 0.0
    %1813 = vmatpush1.msra.mxu0 0.0
    %1814 = vmatprep.subr.mxu0 0.0
    %1815 = vmatpush1.msra.mxu0 0.0
    %1816 = vmatprep.subr.mxu0 0.0
    %1817 = vmatpush1.msra.mxu0 0.0
    %1818 = vmatprep.subr.mxu0 0.0
    %1819 = vmatpush1.msra.mxu0 0.0
    %1820 = vmatprep.subr.mxu0 0.0
    %1821 = vmatpush1.msra.mxu0 0.0
    %1822 = vmatprep.subr.mxu0 0.0
    %1823 = vmatpush1.msra.mxu0 0.0
    %1824 = vmatprep.subr.mxu0 0.0
    %1825 = vmatpush1.msra.mxu0 0.0
    %1826 = vmatprep.subr.mxu0 0.0
    %1827 = vmatpush1.msra.mxu0 0.0
    %1828 = vmatprep.subr.mxu0 0.0
    %1829 = vmatpush1.msra.mxu0 0.0
    %1830 = vmatprep.subr.mxu0 0.0
    %1831 = vmatpush1.msra.mxu0 0.0
    %1832 = vmatprep.subr.mxu0 0.0
    %1833 = vmatpush1.msra.mxu0 0.0
    %1834 = vmatprep.subr.mxu0 0.0
    %1835 = vmatpush1.msra.mxu0 0.0
    %1836 = vmatprep.subr.mxu0 0.0
    %1837 = vmatpush1.msra.mxu0 0.0
    %1838 = vmatprep.subr.mxu0 0.0
    %1839 = vmatpush1.msra.mxu0 0.0
    %1840 = vmatprep.subr.mxu0 0.0
    %1841 = vmatpush1.msra.mxu0 0.0
    %1842 = vmatprep.subr.mxu0 0.0
    %1843 = vmatpush1.msra.mxu0 0.0
    %1844 = vmatprep.subr.mxu0 0.0
    %1845 = vmatpush1.msra.mxu0 0.0
    %1846 = vmatprep.subr.mxu0 0.0
    %1847 = vmatpush1.msra.mxu0 0.0
    %1848 = vmatprep.subr.mxu0 0.0
    %1849 = vmatpush1.msra.mxu0 0.0
    %1850 = vmatprep.subr.mxu0 0.0
    %1851 = vmatpush1.msra.mxu0 0.0
    %1852 = vmatprep.subr.mxu0 0.0
    %1853 = vmatpush1.msra.mxu0 0.0
    %1854 = vmatprep.subr.mxu0 0.0
    %1855 = vmatpush1.msra.mxu0 0.0
    %1856 = vmatprep.mubr.f32.mxu0 0.0
    %1857 = vmatmul.mubr.f32.gmra.mrb[0].mxu0 %v1786
    %v1858 = vpop.f32.mrb[0].mxu0
    %v1859 = vadd.f32 0.0, %v1858
    %v1860 = vpop.f32.mrb[0].mxu0
    %1861 = vdwg.mxu0
    %1863 = vset.pattern.permute.xlu0 0
    %1864 = vperm.xlu0 %1863, %v1708
    %v1865 = vpop.permute.xlu0 %1864
    %v1867 = vmul.f32 %v1865, %v1859
    %v1868 = vlaneseq
    %v1869 = vshrl.u32 %v1868, 7
    %v1870 = vsub.s32 0, %v1869
    %v1871 = vrot.slane %v1709, %v1870
    %v1872 = vadd.f32 %v1867, %v1871
    %vm1873 = vcmask 58368
    %1874 = vst.msk [vmem:[%s18] sm:$0x3] %vm1873, %v1871
    %vm1875 = vcmask 62464
    %1876 = vst.msk [vmem:[%s18 + $0x2] sm:$0x3f] %vm1875, %v1872
    // Predicated region
    $region102: #{astgc_forward.1} parent=1 // pred_check
      _
    $region103: #{astgc_forward.1} parent=1 // pred_check_branch
      %1878 = sbr.rel (0) target = $region105
    $region104: #{astgc_forward.1} parent=1 // pred_region
      _
    $region105: #{astgc_forward.1} parent=1 // pred_fallthru
      _
    // Predicated region
    $region106: #{astgc_forward.1} parent=1 // pred_check
      _
    $region107: #{astgc_forward.1} parent=1 // pred_check_branch
      %1880 = sbr.rel (0) target = $region109
    $region108: #{astgc_forward.1} parent=1 // pred_region
      _
    $region109: #{astgc_forward.1} parent=1 // pred_fallthru
      _
    %1881 = vsyncpa [#allocation3], 1
    %1882 = vsyncpa [#allocation5], 1
    %1883 = vsyncpa [#allocation8], 1
    %1884 = vsyncpa [#allocation11], 1

</llo_original>
